<compile_context>
chip_gen: v5e
topology: v5e:2x2
jax: 0.10.0
libtpu: 0.0.40
codegen_flags: <defaults>
</compile_context>

<pallas_src>
import functools

import jax
import jax.numpy as jnp
from jax.experimental import pallas as pl
from jax.experimental.pallas import tpu as pltpu


# ---------------------------------------------------------------------------
# Kernel 1: one (batch, head) pair per grid point.
#   LayerNorm0 -> per-head Q/K/V projection (head columns chosen by the
#   BlockSpec index_map) -> scaled-dot-product softmax attention.
# ---------------------------------------------------------------------------
def _attn_front_kernel(x_ref, g0_ref, b0_ref,
                       wq_ref, bq_ref, wk_ref, bk_ref, wv_ref, bv_ref,
                       att_ref, *, eps):
    x = x_ref[0]                                        # (L, E) f32

    # LayerNorm0 (biased variance, PyTorch semantics) in f32.
    mu = jnp.mean(x, axis=-1, keepdims=True)
    xc = x - mu
    var = jnp.mean(xc * xc, axis=-1, keepdims=True)
    xn = xc * jax.lax.rsqrt(var + eps) * g0_ref[...] + b0_ref[...]
    xnb = xn.astype(jnp.bfloat16)                       # one cast, reused 3x

    # Per-head projections; weights already bf16, 1/sqrt(hs) folded into Q.
    q = jnp.dot(xnb, wq_ref[0], preferred_element_type=jnp.float32) + bq_ref[0]
    k = jnp.dot(xnb, wk_ref[0], preferred_element_type=jnp.float32) + bk_ref[0]
    v = jnp.dot(xnb, wv_ref[0], preferred_element_type=jnp.float32) + bv_ref[0]

    # scores = (q*scale) @ k^T  (scale pre-folded); bf16 MXU inputs, f32 acc.
    s = jax.lax.dot_general(q.astype(jnp.bfloat16), k.astype(jnp.bfloat16),
                            (((1,), (1,)), ((), ())),
                            preferred_element_type=jnp.float32)      # (L, L)
    m = jnp.max(s, axis=-1, keepdims=True)
    e = jnp.exp(s - m)
    p = e * pl.reciprocal(jnp.sum(e, axis=-1, keepdims=True), approx=True)

    att = jnp.dot(p.astype(jnp.bfloat16), v.astype(jnp.bfloat16),
                  preferred_element_type=jnp.float32)                # (L, hs)
    att_ref[0] = att.astype(jnp.bfloat16)               # bf16 intermediate


# ---------------------------------------------------------------------------
# Kernel 2: one batch element (row block) per grid point.
#   attention output projection + residual + LayerNorm1 + MLP + residual.
# ---------------------------------------------------------------------------
def _attn_back_kernel(att_ref, x_ref, wo_ref, bo_ref, g1_ref, b1_ref,
                      w1_ref, b1m_ref, w2_ref, b2m_ref, o_ref, *, eps):
    att = att_ref[0]          # (L, E) bf16, PyTorch head-merged layout
    x = x_ref[0]              # (L, E) f32, original layer input (residual)

    # MultiHeadAttention's "ffn" linear (output projection), bf16 x bf16 MXU.
    a = jnp.dot(att, wo_ref[...], preferred_element_type=jnp.float32) + bo_ref[...]
    x_res = a + x                                        # residual 1

    # LayerNorm1 (f32 math).
    mu = jnp.mean(x_res, axis=-1, keepdims=True)
    xc = x_res - mu
    var = jnp.mean(xc * xc, axis=-1, keepdims=True)
    xn = xc * jax.lax.rsqrt(var + eps) * g1_ref[...] + b1_ref[...]

    # MLP: Linear(E, 4E) -> LeakyReLU(0.01) -> Linear(4E, E).
    h = jnp.dot(xn.astype(jnp.bfloat16), w1_ref[...],
                preferred_element_type=jnp.float32) + b1m_ref[...]
    h = jnp.where(h >= 0, h, 0.01 * h)
    mlp = jnp.dot(h.astype(jnp.bfloat16), w2_ref[...],
                  preferred_element_type=jnp.float32) + b2m_ref[...]

    o_ref[0] = mlp + x_res                               # residual 2


# ---------------------------------------------------------------------------
# Forward pass: two pallas_calls; glue between them is one pure reshape.
# ---------------------------------------------------------------------------
def encoder_forward(params, x, num_head, eps=1e-5):
    bs, seq, E = x.shape
    hs = E // num_head
    vmem_limit = 64 * 1024 * 1024

    def head_w_spec():        # (H, E, hs) -> head h's (E, hs) slice
        return pl.BlockSpec((1, E, hs), lambda b, h: (h, 0, 0))

    def head_b_spec():        # (H, 1, hs) -> head h's (1, hs) slice
        return pl.BlockSpec((1, 1, hs), lambda b, h: (h, 0, 0))

    def const2(shape):        # whole array, resident across the 2-D grid
        n = len(shape)
        return pl.BlockSpec(shape, lambda b, h: (0,) * n)

    att = pl.pallas_call(
        functools.partial(_attn_front_kernel, eps=eps),
        out_shape=jax.ShapeDtypeStruct((bs * num_head, seq, hs), jnp.bfloat16),
        grid=(bs, num_head),
        in_specs=[
            pl.BlockSpec((1, seq, E), lambda b, h: (b, 0, 0)),   # x (batch b)
            const2((1, E)), const2((1, E)),                      # ln0 gamma/beta
            head_w_spec(), head_b_spec(),                        # Wq, bq (scaled)
            head_w_spec(), head_b_spec(),                        # Wk, bk
            head_w_spec(), head_b_spec(),                        # Wv, bv
        ],
        out_specs=pl.BlockSpec((1, seq, hs),
                               lambda b, h: (b * num_head + h, 0, 0)),
        compiler_params=pltpu.CompilerParams(
            dimension_semantics=("parallel", "parallel"),
            vmem_limit_bytes=vmem_limit),
    )(x, params["ln0_g"], params["ln0_b"],
      params["wq"], params["bq"], params["wk"], params["bk"],
      params["wv"], params["bv"])

    # PyTorch: atten.reshape(bs, l, emb_size) on the (bs, H, L, hs) tensor
    # (heads NOT transposed back) -> exactly this row-major reshape.
    att_merged = att.reshape(bs, seq, E)

    def const1(shape):
        n = len(shape)
        return pl.BlockSpec(shape, lambda i: (0,) * n)

    out = pl.pallas_call(
        functools.partial(_attn_back_kernel, eps=eps),
        out_shape=jax.ShapeDtypeStruct((bs, seq, E), jnp.float32),
        grid=(bs,),
        in_specs=[
            pl.BlockSpec((1, seq, E), lambda i: (i, 0, 0)),  # att (bf16, merged)
            pl.BlockSpec((1, seq, E), lambda i: (i, 0, 0)),  # x (residual)
            const1((E, E)), const1((1, E)),                  # wo, bo
            const1((1, E)), const1((1, E)),                  # ln1 gamma/beta
            const1((E, 4 * E)), const1((1, 4 * E)),          # w1, b1
            const1((4 * E, E)), const1((1, E)),              # w2, b2
        ],
        out_specs=pl.BlockSpec((1, seq, E), lambda i: (i, 0, 0)),
        compiler_params=pltpu.CompilerParams(
            dimension_semantics=("parallel",),
            vmem_limit_bytes=vmem_limit),
    )(att_merged, x, params["wo"], params["bo"],
      params["ln1_g"], params["ln1_b"],
      params["w1"], params["b1"], params["w2"], params["b2"])

    return out


# ---------------------------------------------------------------------------
# Parameters: weights stored bf16; Q/K/V pre-split per head; softmax scale
# folded into the Q weight/bias.
# ---------------------------------------------------------------------------
def init_params(key, embed_size, num_head, scale=0.02):
    E, H = embed_size, num_head
    hs = E // H

    def lin(k, fin, fout):
        kw, kb = jax.random.split(k)
        w = scale * jax.random.normal(kw, (fin, fout), jnp.float32)
        b = scale * jax.random.normal(kb, (fout,), jnp.float32)
        return w, b

    keys = jax.random.split(key, 6)
    wq, bq = lin(keys[0], E, E)
    wk, bk = lin(keys[1], E, E)
    wv, bv = lin(keys[2], E, E)
    wo, bo = lin(keys[3], E, E)
    w1, b1 = lin(keys[4], E, 4 * E)
    w2, b2 = lin(keys[5], 4 * E, E)

    sm_scale = float(hs) ** -0.5

    def split_w(w):   # (E, E) -> (H, E, hs); head h owns columns [h*hs,(h+1)*hs)
        return jnp.transpose(w.reshape(E, H, hs), (1, 0, 2))

    def split_b(b):   # (E,) -> (H, 1, hs)
        return b.reshape(H, 1, hs)

    return {
        "ln0_g": jnp.ones((1, E), jnp.float32),
        "ln0_b": jnp.zeros((1, E), jnp.float32),
        "ln1_g": jnp.ones((1, E), jnp.float32),
        "ln1_b": jnp.zeros((1, E), jnp.float32),
        "wq": split_w(wq * sm_scale).astype(jnp.bfloat16),
        "bq": split_b(bq * sm_scale),
        "wk": split_w(wk).astype(jnp.bfloat16),
        "bk": split_b(bk),
        "wv": split_w(wv).astype(jnp.bfloat16),
        "bv": split_b(bv),
        "wo": wo.astype(jnp.bfloat16),
        "bo": bo.reshape(1, E),
        "w1": w1.astype(jnp.bfloat16),
        "b1": b1.reshape(1, 4 * E),
        "w2": w2.astype(jnp.bfloat16),
        "b2": b2.reshape(1, E),
    }


# ---------------------------------------------------------------------------
# Main
# ---------------------------------------------------------------------------
if __name__ == "__main__":
    bs, seq, embed_size, num_head = 2, 8, 32, 4

    key = jax.random.PRNGKey(0)
    pkey, xkey = jax.random.split(key)
    params = init_params(pkey, embed_size, num_head)
    x = jax.random.normal(xkey, (bs, seq, embed_size), dtype=jnp.float32)

    fwd = jax.jit(functools.partial(encoder_forward, num_head=num_head))
    out = jax.block_until_ready(fwd(params, x))

    assert out.shape == (bs, seq, embed_size), out.shape
    assert bool(jnp.all(jnp.isfinite(out)))
    print("KERNEL_OK")
</pallas_src>

<mosaic_0001>
module attributes {stable_mosaic.version = 11 : i64} {
  func.func @_attn_front_kernel(%arg0: i32, %arg1: i32, %arg2: memref<1x8x32xf32, #tpu.memory_space<vmem>>, %arg3: memref<1x32xf32, #tpu.memory_space<vmem>>, %arg4: memref<1x32xf32, #tpu.memory_space<vmem>>, %arg5: memref<1x32x8xbf16, #tpu.memory_space<vmem>>, %arg6: memref<1x1x8xf32, #tpu.memory_space<vmem>>, %arg7: memref<1x32x8xbf16, #tpu.memory_space<vmem>>, %arg8: memref<1x1x8xf32, #tpu.memory_space<vmem>>, %arg9: memref<1x32x8xbf16, #tpu.memory_space<vmem>>, %arg10: memref<1x1x8xf32, #tpu.memory_space<vmem>>, %arg11: memref<1x8x8xbf16, #tpu.memory_space<vmem>>) attributes {dimension_semantics = [#tpu.dimension_semantics<parallel>, #tpu.dimension_semantics<parallel>], iteration_bounds = array<i64: 2, 4>, scalar_prefetch = 0 : i64, scratch_operands = 0 : i64, tpu.core_type = #tpu.core_type<tc>, window_params = [{transform_indices = @transform_0, window_bounds = array<i64: 1, 8, 32>}, {pipeline_mode = #tpu.pipeline_mode<synchronous>, transform_indices = @transform_1, window_bounds = array<i64: 1, 32>}, {pipeline_mode = #tpu.pipeline_mode<synchronous>, transform_indices = @transform_2, window_bounds = array<i64: 1, 32>}, {transform_indices = @transform_3, window_bounds = array<i64: 1, 32, 8>}, {transform_indices = @transform_4, window_bounds = array<i64: 1, 1, 8>}, {transform_indices = @transform_5, window_bounds = array<i64: 1, 32, 8>}, {transform_indices = @transform_6, window_bounds = array<i64: 1, 1, 8>}, {transform_indices = @transform_7, window_bounds = array<i64: 1, 32, 8>}, {transform_indices = @transform_8, window_bounds = array<i64: 1, 1, 8>}, {transform_indices = @transform_9, window_bounds = array<i64: 1, 8, 8>}]} {
    %c0 = arith.constant 0 : index
    %c0_0 = arith.constant 0 : index
    %c0_1 = arith.constant 0 : index
    %0 = vector.load %arg2[%c0, %c0_0, %c0_1] : memref<1x8x32xf32, #tpu.memory_space<vmem>>, vector<1x8x32xf32>
    %1 = vector.shape_cast %0 : vector<1x8x32xf32> to vector<8x32xf32>
    %cst = arith.constant dense<0.000000e+00> : vector<8xf32>
    %2 = vector.multi_reduction <add>, %1, %cst [1] : vector<8x32xf32> to vector<8xf32>
    %3 = vector.shape_cast %2 : vector<8xf32> to vector<8x1xf32>
    %cst_2 = arith.constant 3.200000e+01 : f32
    %4 = vector.broadcast %cst_2 : f32 to vector<8x1xf32>
    %5 = arith.divf %3, %4 : vector<8x1xf32>
    %6 = vector.broadcast %5 : vector<8x1xf32> to vector<8x32xf32>
    %7 = arith.subf %1, %6 : vector<8x32xf32>
    %8 = arith.mulf %7, %7 : vector<8x32xf32>
    %cst_3 = arith.constant dense<0.000000e+00> : vector<8xf32>
    %9 = vector.multi_reduction <add>, %8, %cst_3 [1] : vector<8x32xf32> to vector<8xf32>
    %10 = vector.shape_cast %9 : vector<8xf32> to vector<8x1xf32>
    %cst_4 = arith.constant 3.200000e+01 : f32
    %11 = vector.broadcast %cst_4 : f32 to vector<8x1xf32>
    %12 = arith.divf %10, %11 : vector<8x1xf32>
    %cst_5 = arith.constant 9.99999974E-6 : f32
    %13 = vector.broadcast %cst_5 : f32 to vector<8x1xf32>
    %14 = arith.addf %12, %13 : vector<8x1xf32>
    %15 = math.rsqrt %14 : vector<8x1xf32>
    %16 = vector.broadcast %15 : vector<8x1xf32> to vector<8x32xf32>
    %17 = arith.mulf %7, %16 : vector<8x32xf32>
    %c0_6 = arith.constant 0 : index
    %c0_7 = arith.constant 0 : index
    %18 = vector.load %arg3[%c0_6, %c0_7] : memref<1x32xf32, #tpu.memory_space<vmem>>, vector<1x32xf32>
    %19 = vector.broadcast %18 : vector<1x32xf32> to vector<8x32xf32>
    %20 = arith.mulf %17, %19 : vector<8x32xf32>
    %c0_8 = arith.constant 0 : index
    %c0_9 = arith.constant 0 : index
    %21 = vector.load %arg4[%c0_8, %c0_9] : memref<1x32xf32, #tpu.memory_space<vmem>>, vector<1x32xf32>
    %22 = vector.broadcast %21 : vector<1x32xf32> to vector<8x32xf32>
    %23 = arith.addf %20, %22 : vector<8x32xf32>
    %24 = arith.truncf %23 : vector<8x32xf32> to vector<8x32xbf16>
    %c0_10 = arith.constant 0 : index
    %c0_11 = arith.constant 0 : index
    %c0_12 = arith.constant 0 : index
    %25 = vector.load %arg5[%c0_10, %c0_11, %c0_12] : memref<1x32x8xbf16, #tpu.memory_space<vmem>>, vector<1x32x8xbf16>
    %26 = vector.shape_cast %25 : vector<1x32x8xbf16> to vector<32x8xbf16>
    %cst_13 = arith.constant dense<0.000000e+00> : vector<8x8xf32>
    %27 = tpu.matmul %24, %26, %cst_13 {dimension_numbers = #tpu.dot_dimension_numbers<[1], [0], [0], [1], [0, 0, 1, 1], [], []>} : vector<8x32xbf16>, vector<32x8xbf16>, vector<8x8xf32> -> vector<8x8xf32>
    %c0_14 = arith.constant 0 : index
    %c0_15 = arith.constant 0 : index
    %c0_16 = arith.constant 0 : index
    %28 = vector.load %arg6[%c0_14, %c0_15, %c0_16] : memref<1x1x8xf32, #tpu.memory_space<vmem>>, vector<1x1x8xf32>
    %29 = vector.shape_cast %28 : vector<1x1x8xf32> to vector<1x8xf32>
    %30 = vector.broadcast %29 : vector<1x8xf32> to vector<8x8xf32>
    %31 = arith.addf %27, %30 : vector<8x8xf32>
    %c0_17 = arith.constant 0 : index
    %c0_18 = arith.constant 0 : index
    %c0_19 = arith.constant 0 : index
    %32 = vector.load %arg7[%c0_17, %c0_18, %c0_19] : memref<1x32x8xbf16, #tpu.memory_space<vmem>>, vector<1x32x8xbf16>
    %33 = vector.shape_cast %32 : vector<1x32x8xbf16> to vector<32x8xbf16>
    %cst_20 = arith.constant dense<0.000000e+00> : vector<8x8xf32>
    %34 = tpu.matmul %24, %33, %cst_20 {dimension_numbers = #tpu.dot_dimension_numbers<[1], [0], [0], [1], [0, 0, 1, 1], [], []>} : vector<8x32xbf16>, vector<32x8xbf16>, vector<8x8xf32> -> vector<8x8xf32>
    %c0_21 = arith.constant 0 : index
    %c0_22 = arith.constant 0 : index
    %c0_23 = arith.constant 0 : index
    %35 = vector.load %arg8[%c0_21, %c0_22, %c0_23] : memref<1x1x8xf32, #tpu.memory_space<vmem>>, vector<1x1x8xf32>
    %36 = vector.shape_cast %35 : vector<1x1x8xf32> to vector<1x8xf32>
    %37 = vector.broadcast %36 : vector<1x8xf32> to vector<8x8xf32>
    %38 = arith.addf %34, %37 : vector<8x8xf32>
    %c0_24 = arith.constant 0 : index
    %c0_25 = arith.constant 0 : index
    %c0_26 = arith.constant 0 : index
    %39 = vector.load %arg9[%c0_24, %c0_25, %c0_26] : memref<1x32x8xbf16, #tpu.memory_space<vmem>>, vector<1x32x8xbf16>
    %40 = vector.shape_cast %39 : vector<1x32x8xbf16> to vector<32x8xbf16>
    %cst_27 = arith.constant dense<0.000000e+00> : vector<8x8xf32>
    %41 = tpu.matmul %24, %40, %cst_27 {dimension_numbers = #tpu.dot_dimension_numbers<[1], [0], [0], [1], [0, 0, 1, 1], [], []>} : vector<8x32xbf16>, vector<32x8xbf16>, vector<8x8xf32> -> vector<8x8xf32>
    %c0_28 = arith.constant 0 : index
    %c0_29 = arith.constant 0 : index
    %c0_30 = arith.constant 0 : index
    %42 = vector.load %arg10[%c0_28, %c0_29, %c0_30] : memref<1x1x8xf32, #tpu.memory_space<vmem>>, vector<1x1x8xf32>
    %43 = vector.shape_cast %42 : vector<1x1x8xf32> to vector<1x8xf32>
    %44 = vector.broadcast %43 : vector<1x8xf32> to vector<8x8xf32>
    %45 = arith.addf %41, %44 : vector<8x8xf32>
    %46 = arith.truncf %31 : vector<8x8xf32> to vector<8x8xbf16>
    %47 = arith.truncf %38 : vector<8x8xf32> to vector<8x8xbf16>
    %cst_31 = arith.constant dense<0.000000e+00> : vector<8x8xf32>
    %48 = tpu.matmul %46, %47, %cst_31 {dimension_numbers = #tpu.dot_dimension_numbers<[1], [1], [0], [0], [0, 0, 1, 0], [], []>} : vector<8x8xbf16>, vector<8x8xbf16>, vector<8x8xf32> -> vector<8x8xf32>
    %cst_32 = arith.constant dense<0xFF800000> : vector<8xf32>
    %49 = vector.multi_reduction <maximumf>, %48, %cst_32 [1] : vector<8x8xf32> to vector<8xf32>
    %50 = vector.shape_cast %49 : vector<8xf32> to vector<8x1xf32>
    %51 = vector.broadcast %50 : vector<8x1xf32> to vector<8x8xf32>
    %52 = arith.subf %48, %51 : vector<8x8xf32>
    %53 = math.exp %52 : vector<8x8xf32>
    %cst_33 = arith.constant dense<0.000000e+00> : vector<8xf32>
    %54 = vector.multi_reduction <add>, %53, %cst_33 [1] : vector<8x8xf32> to vector<8xf32>
    %55 = vector.shape_cast %54 : vector<8xf32> to vector<8x1xf32>
    %56 = tpu.reciprocal %55 {approx = true} : vector<8x1xf32> -> vector<8x1xf32>
    %57 = vector.broadcast %56 : vector<8x1xf32> to vector<8x8xf32>
    %58 = arith.mulf %53, %57 : vector<8x8xf32>
    %59 = arith.truncf %58 : vector<8x8xf32> to vector<8x8xbf16>
    %60 = arith.truncf %45 : vector<8x8xf32> to vector<8x8xbf16>
    %cst_34 = arith.constant dense<0.000000e+00> : vector<8x8xf32>
    %61 = tpu.matmul %59, %60, %cst_34 {dimension_numbers = #tpu.dot_dimension_numbers<[1], [0], [0], [1], [0, 0, 1, 1], [], []>} : vector<8x8xbf16>, vector<8x8xbf16>, vector<8x8xf32> -> vector<8x8xf32>
    %62 = arith.truncf %61 : vector<8x8xf32> to vector<8x8xbf16>
    %c0_35 = arith.constant 0 : index
    %c0_36 = arith.constant 0 : index
    %c0_37 = arith.constant 0 : index
    %63 = vector.load %arg11[%c0_35, %c0_36, %c0_37] : memref<1x8x8xbf16, #tpu.memory_space<vmem>>, vector<1x8x8xbf16>
    %64 = vector.shape_cast %63 : vector<1x8x8xbf16> to vector<8x8xbf16>
    %65 = vector.shape_cast %62 : vector<8x8xbf16> to vector<1x8x8xbf16>
    tpu.vector_store %arg11[%c0_35, %c0_36, %c0_37], %65 {strides = array<i32>} : memref<1x8x8xbf16, #tpu.memory_space<vmem>>, vector<1x8x8xbf16>,
    return
  }
  func.func @transform_0(%arg0: i32, %arg1: i32) -> (i32, i32, i32) {
    %c0_i32 = arith.constant 0 : i32
    %c0_i32_0 = arith.constant 0 : i32
    %c0_i32_1 = arith.constant 0 : i32
    return %arg0, %c0_i32, %c0_i32_0 : i32, i32, i32
  }
  func.func @transform_1(%arg0: i32, %arg1: i32) -> (i32, i32) {
    %c0_i32 = arith.constant 0 : i32
    %c0_i32_0 = arith.constant 0 : i32
    %c0_i32_1 = arith.constant 0 : i32
    return %c0_i32, %c0_i32_0 : i32, i32
  }
  func.func @transform_2(%arg0: i32, %arg1: i32) -> (i32, i32) {
    %c0_i32 = arith.constant 0 : i32
    %c0_i32_0 = arith.constant 0 : i32
    %c0_i32_1 = arith.constant 0 : i32
    return %c0_i32, %c0_i32_0 : i32, i32
  }
  func.func @transform_3(%arg0: i32, %arg1: i32) -> (i32, i32, i32) {
    %c0_i32 = arith.constant 0 : i32
    %c0_i32_0 = arith.constant 0 : i32
    %c0_i32_1 = arith.constant 0 : i32
    return %arg1, %c0_i32, %c0_i32_0 : i32, i32, i32
  }
  func.func @transform_4(%arg0: i32, %arg1: i32) -> (i32, i32, i32) {
    %c0_i32 = arith.constant 0 : i32
    %c0_i32_0 = arith.constant 0 : i32
    %c0_i32_1 = arith.constant 0 : i32
    return %arg1, %c0_i32, %c0_i32_0 : i32, i32, i32
  }
  func.func @transform_5(%arg0: i32, %arg1: i32) -> (i32, i32, i32) {
    %c0_i32 = arith.constant 0 : i32
    %c0_i32_0 = arith.constant 0 : i32
    %c0_i32_1 = arith.constant 0 : i32
    return %arg1, %c0_i32, %c0_i32_0 : i32, i32, i32
  }
  func.func @transform_6(%arg0: i32, %arg1: i32) -> (i32, i32, i32) {
    %c0_i32 = arith.constant 0 : i32
    %c0_i32_0 = arith.constant 0 : i32
    %c0_i32_1 = arith.constant 0 : i32
    return %arg1, %c0_i32, %c0_i32_0 : i32, i32, i32
  }
  func.func @transform_7(%arg0: i32, %arg1: i32) -> (i32, i32, i32) {
    %c0_i32 = arith.constant 0 : i32
    %c0_i32_0 = arith.constant 0 : i32
    %c0_i32_1 = arith.constant 0 : i32
    return %arg1, %c0_i32, %c0_i32_0 : i32, i32, i32
  }
  func.func @transform_8(%arg0: i32, %arg1: i32) -> (i32, i32, i32) {
    %c0_i32 = arith.constant 0 : i32
    %c0_i32_0 = arith.constant 0 : i32
    %c0_i32_1 = arith.constant 0 : i32
    return %arg1, %c0_i32, %c0_i32_0 : i32, i32, i32
  }
  func.func @transform_9(%arg0: i32, %arg1: i32) -> (i32, i32, i32) {
    %c4_i32 = arith.constant 4 : i32
    %0 = arith.muli %arg0, %c4_i32 : i32
    %1 = arith.addi %0, %arg1 : i32
    %c0_i32 = arith.constant 0 : i32
    %c0_i32_0 = arith.constant 0 : i32
    %c0_i32_1 = arith.constant 0 : i32
    return %1, %c0_i32, %c0_i32_0 : i32, i32, i32
  }
}

module attributes {stable_mosaic.version = 11 : i64} {
  func.func @_attn_back_kernel(%arg0: i32, %arg1: memref<1x8x32xbf16, #tpu.memory_space<vmem>>, %arg2: memref<1x8x32xf32, #tpu.memory_space<vmem>>, %arg3: memref<32x32xbf16, #tpu.memory_space<vmem>>, %arg4: memref<1x32xf32, #tpu.memory_space<vmem>>, %arg5: memref<1x32xf32, #tpu.memory_space<vmem>>, %arg6: memref<1x32xf32, #tpu.memory_space<vmem>>, %arg7: memref<32x128xbf16, #tpu.memory_space<vmem>>, %arg8: memref<1x128xf32, #tpu.memory_space<vmem>>, %arg9: memref<128x32xbf16, #tpu.memory_space<vmem>>, %arg10: memref<1x32xf32, #tpu.memory_space<vmem>>, %arg11: memref<1x8x32xf32, #tpu.memory_space<vmem>>) attributes {dimension_semantics = [#tpu.dimension_semantics<parallel>], iteration_bounds = array<i64: 2>, scalar_prefetch = 0 : i64, scratch_operands = 0 : i64, tpu.core_type = #tpu.core_type<tc>, window_params = [{transform_indices = @transform_0, window_bounds = array<i64: 1, 8, 32>}, {transform_indices = @transform_1, window_bounds = array<i64: 1, 8, 32>}, {pipeline_mode = #tpu.pipeline_mode<synchronous>, transform_indices = @transform_2, window_bounds = array<i64: 32, 32>}, {pipeline_mode = #tpu.pipeline_mode<synchronous>, transform_indices = @transform_3, window_bounds = array<i64: 1, 32>}, {pipeline_mode = #tpu.pipeline_mode<synchronous>, transform_indices = @transform_4, window_bounds = array<i64: 1, 32>}, {pipeline_mode = #tpu.pipeline_mode<synchronous>, transform_indices = @transform_5, window_bounds = array<i64: 1, 32>}, {pipeline_mode = #tpu.pipeline_mode<synchronous>, transform_indices = @transform_6, window_bounds = array<i64: 32, 128>}, {pipeline_mode = #tpu.pipeline_mode<synchronous>, transform_indices = @transform_7, window_bounds = array<i64: 1, 128>}, {pipeline_mode = #tpu.pipeline_mode<synchronous>, transform_indices = @transform_8, window_bounds = array<i64: 128, 32>}, {pipeline_mode = #tpu.pipeline_mode<synchronous>, transform_indices = @transform_9, window_bounds = array<i64: 1, 32>}, {transform_indices = @transform_10, window_bounds = array<i64: 1, 8, 32>}]} {
    %c0 = arith.constant 0 : index
    %c0_0 = arith.constant 0 : index
    %c0_1 = arith.constant 0 : index
    %0 = vector.load %arg1[%c0, %c0_0, %c0_1] : memref<1x8x32xbf16, #tpu.memory_space<vmem>>, vector<1x8x32xbf16>
    %1 = vector.shape_cast %0 : vector<1x8x32xbf16> to vector<8x32xbf16>
    %c0_2 = arith.constant 0 : index
    %c0_3 = arith.constant 0 : index
    %c0_4 = arith.constant 0 : index
    %2 = vector.load %arg2[%c0_2, %c0_3, %c0_4] : memref<1x8x32xf32, #tpu.memory_space<vmem>>, vector<1x8x32xf32>
    %3 = vector.shape_cast %2 : vector<1x8x32xf32> to vector<8x32xf32>
    %c0_5 = arith.constant 0 : index
    %c0_6 = arith.constant 0 : index
    %4 = vector.load %arg3[%c0_5, %c0_6] : memref<32x32xbf16, #tpu.memory_space<vmem>>, vector<32x32xbf16>
    %cst = arith.constant dense<0.000000e+00> : vector<8x32xf32>
    %5 = tpu.matmul %1, %4, %cst {dimension_numbers = #tpu.dot_dimension_numbers<[1], [0], [0], [1], [0, 0, 1, 1], [], []>} : vector<8x32xbf16>, vector<32x32xbf16>, vector<8x32xf32> -> vector<8x32xf32>
    %c0_7 = arith.constant 0 : index
    %c0_8 = arith.constant 0 : index
    %6 = vector.load %arg4[%c0_7, %c0_8] : memref<1x32xf32, #tpu.memory_space<vmem>>, vector<1x32xf32>
    %7 = vector.broadcast %6 : vector<1x32xf32> to vector<8x32xf32>
    %8 = arith.addf %5, %7 : vector<8x32xf32>
    %9 = arith.addf %8, %3 : vector<8x32xf32>
    %cst_9 = arith.constant dense<0.000000e+00> : vector<8xf32>
    %10 = vector.multi_reduction <add>, %9, %cst_9 [1] : vector<8x32xf32> to vector<8xf32>
    %11 = vector.shape_cast %10 : vector<8xf32> to vector<8x1xf32>
    %cst_10 = arith.constant 3.200000e+01 : f32
    %12 = vector.broadcast %cst_10 : f32 to vector<8x1xf32>
    %13 = arith.divf %11, %12 : vector<8x1xf32>
    %14 = vector.broadcast %13 : vector<8x1xf32> to vector<8x32xf32>
    %15 = arith.subf %9, %14 : vector<8x32xf32>
    %16 = arith.mulf %15, %15 : vector<8x32xf32>
    %cst_11 = arith.constant dense<0.000000e+00> : vector<8xf32>
    %17 = vector.multi_reduction <add>, %16, %cst_11 [1] : vector<8x32xf32> to vector<8xf32>
    %18 = vector.shape_cast %17 : vector<8xf32> to vector<8x1xf32>
    %cst_12 = arith.constant 3.200000e+01 : f32
    %19 = vector.broadcast %cst_12 : f32 to vector<8x1xf32>
    %20 = arith.divf %18, %19 : vector<8x1xf32>
    %cst_13 = arith.constant 9.99999974E-6 : f32
    %21 = vector.broadcast %cst_13 : f32 to vector<8x1xf32>
    %22 = arith.addf %20, %21 : vector<8x1xf32>
    %23 = math.rsqrt %22 : vector<8x1xf32>
    %24 = vector.broadcast %23 : vector<8x1xf32> to vector<8x32xf32>
    %25 = arith.mulf %15, %24 : vector<8x32xf32>
    %c0_14 = arith.constant 0 : index
    %c0_15 = arith.constant 0 : index
    %26 = vector.load %arg5[%c0_14, %c0_15] : memref<1x32xf32, #tpu.memory_space<vmem>>, vector<1x32xf32>
    %27 = vector.broadcast %26 : vector<1x32xf32> to vector<8x32xf32>
    %28 = arith.mulf %25, %27 : vector<8x32xf32>
    %c0_16 = arith.constant 0 : index
    %c0_17 = arith.constant 0 : index
    %29 = vector.load %arg6[%c0_16, %c0_17] : memref<1x32xf32, #tpu.memory_space<vmem>>, vector<1x32xf32>
    %30 = vector.broadcast %29 : vector<1x32xf32> to vector<8x32xf32>
    %31 = arith.addf %28, %30 : vector<8x32xf32>
    %32 = arith.truncf %31 : vector<8x32xf32> to vector<8x32xbf16>
    %c0_18 = arith.constant 0 : index
    %c0_19 = arith.constant 0 : index
    %33 = vector.load %arg7[%c0_18, %c0_19] : memref<32x128xbf16, #tpu.memory_space<vmem>>, vector<32x128xbf16>
    %cst_20 = arith.constant dense<0.000000e+00> : vector<8x128xf32>
    %34 = tpu.matmul %32, %33, %cst_20 {dimension_numbers = #tpu.dot_dimension_numbers<[1], [0], [0], [1], [0, 0, 1, 1], [], []>} : vector<8x32xbf16>, vector<32x128xbf16>, vector<8x128xf32> -> vector<8x128xf32>
    %c0_21 = arith.constant 0 : index
    %c0_22 = arith.constant 0 : index
    %35 = vector.load %arg8[%c0_21, %c0_22] : memref<1x128xf32, #tpu.memory_space<vmem>>, vector<1x128xf32>
    %36 = vector.broadcast %35 : vector<1x128xf32> to vector<8x128xf32>
    %37 = arith.addf %34, %36 : vector<8x128xf32>
    %cst_23 = arith.constant 0.000000e+00 : f32
    %38 = vector.broadcast %cst_23 : f32 to vector<8x128xf32>
    %39 = arith.cmpf oge, %37, %38 : vector<8x128xf32>
    %cst_24 = arith.constant 0.00999999977 : f32
    %40 = vector.broadcast %cst_24 : f32 to vector<8x128xf32>
    %41 = arith.mulf %40, %37 : vector<8x128xf32>
    %42 = arith.select %39, %37, %41 : vector<8x128xi1>, vector<8x128xf32>
    %43 = arith.truncf %42 : vector<8x128xf32> to vector<8x128xbf16>
    %c0_25 = arith.constant 0 : index
    %c0_26 = arith.constant 0 : index
    %44 = vector.load %arg9[%c0_25, %c0_26] : memref<128x32xbf16, #tpu.memory_space<vmem>>, vector<128x32xbf16>
    %cst_27 = arith.constant dense<0.000000e+00> : vector<8x32xf32>
    %45 = tpu.matmul %43, %44, %cst_27 {dimension_numbers = #tpu.dot_dimension_numbers<[1], [0], [0], [1], [0, 0, 1, 1], [], []>} : vector<8x128xbf16>, vector<128x32xbf16>, vector<8x32xf32> -> vector<8x32xf32>
    %c0_28 = arith.constant 0 : index
    %c0_29 = arith.constant 0 : index
    %46 = vector.load %arg10[%c0_28, %c0_29] : memref<1x32xf32, #tpu.memory_space<vmem>>, vector<1x32xf32>
    %47 = vector.broadcast %46 : vector<1x32xf32> to vector<8x32xf32>
    %48 = arith.addf %45, %47 : vector<8x32xf32>
    %49 = arith.addf %48, %9 : vector<8x32xf32>
    %c0_30 = arith.constant 0 : index
    %c0_31 = arith.constant 0 : index
    %c0_32 = arith.constant 0 : index
    %50 = vector.load %arg11[%c0_30, %c0_31, %c0_32] : memref<1x8x32xf32, #tpu.memory_space<vmem>>, vector<1x8x32xf32>
    %51 = vector.shape_cast %50 : vector<1x8x32xf32> to vector<8x32xf32>
    %52 = vector.shape_cast %49 : vector<8x32xf32> to vector<1x8x32xf32>
    tpu.vector_store %arg11[%c0_30, %c0_31, %c0_32], %52 {strides = array<i32>} : memref<1x8x32xf32, #tpu.memory_space<vmem>>, vector<1x8x32xf32>,
    return
  }
  func.func @transform_0(%arg0: i32) -> (i32, i32, i32) {
    %c0_i32 = arith.constant 0 : i32
    %c0_i32_0 = arith.constant 0 : i32
    %c0_i32_1 = arith.constant 0 : i32
    return %arg0, %c0_i32, %c0_i32_0 : i32, i32, i32
  }
  func.func @transform_1(%arg0: i32) -> (i32, i32, i32) {
    %c0_i32 = arith.constant 0 : i32
    %c0_i32_0 = arith.constant 0 : i32
    %c0_i32_1 = arith.constant 0 : i32
    return %arg0, %c0_i32, %c0_i32_0 : i32, i32, i32
  }
  func.func @transform_2(%arg0: i32) -> (i32, i32) {
    %c0_i32 = arith.constant 0 : i32
    %c0_i32_0 = arith.constant 0 : i32
    %c0_i32_1 = arith.constant 0 : i32
    return %c0_i32, %c0_i32_0 : i32, i32
  }
  func.func @transform_3(%arg0: i32) -> (i32, i32) {
    %c0_i32 = arith.constant 0 : i32
    %c0_i32_0 = arith.constant 0 : i32
    %c0_i32_1 = arith.constant 0 : i32
    return %c0_i32, %c0_i32_0 : i32, i32
  }
  func.func @transform_4(%arg0: i32) -> (i32, i32) {
    %c0_i32 = arith.constant 0 : i32
    %c0_i32_0 = arith.constant 0 : i32
    %c0_i32_1 = arith.constant 0 : i32
    return %c0_i32, %c0_i32_0 : i32, i32
  }
  func.func @transform_5(%arg0: i32) -> (i32, i32) {
    %c0_i32 = arith.constant 0 : i32
    %c0_i32_0 = arith.constant 0 : i32
    %c0_i32_1 = arith.constant 0 : i32
    return %c0_i32, %c0_i32_0 : i32, i32
  }
  func.func @transform_6(%arg0: i32) -> (i32, i32) {
    %c0_i32 = arith.constant 0 : i32
    %c0_i32_0 = arith.constant 0 : i32
    %c0_i32_1 = arith.constant 0 : i32
    return %c0_i32, %c0_i32_0 : i32, i32
  }
  func.func @transform_7(%arg0: i32) -> (i32, i32) {
    %c0_i32 = arith.constant 0 : i32
    %c0_i32_0 = arith.constant 0 : i32
    %c0_i32_1 = arith.constant 0 : i32
    return %c0_i32, %c0_i32_0 : i32, i32
  }
  func.func @transform_8(%arg0: i32) -> (i32, i32) {
    %c0_i32 = arith.constant 0 : i32
    %c0_i32_0 = arith.constant 0 : i32
    %c0_i32_1 = arith.constant 0 : i32
    return %c0_i32, %c0_i32_0 : i32, i32
  }
  func.func @transform_9(%arg0: i32) -> (i32, i32) {
    %c0_i32 = arith.constant 0 : i32
    %c0_i32_0 = arith.constant 0 : i32
    %c0_i32_1 = arith.constant 0 : i32
    return %c0_i32, %c0_i32_0 : i32, i32
  }
  func.func @transform_10(%arg0: i32) -> (i32, i32, i32) {
    %c0_i32 = arith.constant 0 : i32
    %c0_i32_0 = arith.constant 0 : i32
    %c0_i32_1 = arith.constant 0 : i32
    return %arg0, %c0_i32, %c0_i32_0 : i32, i32, i32
  }
}

</mosaic_0001>

<llo_original>
// kernel: encoder_forward.2
$region0: #{encoder_forward.2}
  #allocation0 [shape = 'u32[]', space=smem, size = 0x4, offset = 0x4, fixed_abs, tag = 'smem constant byte address 0x4 - core index']
  #allocation1 [shape = 'u32[72,128]{1,0:T(1,128)}', space=vmem, size = 0x9000, scoped, tag = 'internal scratch']
  %s0 = inlined_call_operand.vmem [shape: f32[2,8,32], index: 0, kind: input, shape index: {}]
  %s1 = inlined_call_operand.vmem [shape: f32[1,32], index: 1, kind: input, shape index: {}]
  %s2 = inlined_call_operand.vmem [shape: f32[1,32], index: 2, kind: input, shape index: {}]
  %s3 = inlined_call_operand.vmem [shape: bf16[4,32,8], index: 3, kind: input, shape index: {}]
  %s4 = inlined_call_operand.vmem [shape: f32[4,1,8], index: 4, kind: input, shape index: {}]
  %s5 = inlined_call_operand.vmem [shape: bf16[4,32,8], index: 5, kind: input, shape index: {}]
  %s6 = inlined_call_operand.vmem [shape: f32[4,1,8], index: 6, kind: input, shape index: {}]
  %s7 = inlined_call_operand.vmem [shape: bf16[4,32,8], index: 7, kind: input, shape index: {}]
  %s8 = inlined_call_operand.vmem [shape: f32[4,1,8], index: 8, kind: input, shape index: {}]
  %s9 = inlined_call_operand.vmem [shape: bf16[8,8,8], index: 9, kind: output, shape index: {}]
  %s10 = sld [smem:[#allocation0]]
  $region69: #{encoder_forward.2} parent=0
    _
  %s12 = ssub.s32 1, %s10
  %s13 = scalar_select 0, %s12, %s10
  loop: start=0, step=1, limit=10
  $region2: #{encoder_forward.2} parent=0 // loop_pre_header
    _
  $region3: #{encoder_forward.2} parent=0 // loop_header
    %s15 = sphi 0, %s19
    %p16 = scmp.ge.s32.totalorder %s15, 10
    %s22 = sphi 0, %s34
    %s23 = sphi 0, %s30
    %s24 = sphi 0, %s22
    %s25 = sphi 0, %s23
    %s26 = sphi 0, %s24
    %s27 = sphi 0, %s25
    %s37 = sphi 0, %s39
    %s40 = sphi 0, %s37
    %s41 = sphi 0, %s40
    %s57 = sphi 0, %s41
    %s61 = sphi 0, %s61
    %s63 = sphi 0, %s61
    %s64 = sphi 0, %s63
    %s78 = sphi 0, %s64
    %s82 = sphi 0, %s82
    %s84 = sphi 0, %s82
    %s85 = sphi 0, %s84
    %s99 = sphi 0, %s85
    %s105 = sphi 0, %s107
    %s108 = sphi 0, %s105
    %s109 = sphi 0, %s108
    %s125 = sphi 0, %s109
    %s131 = sphi 0, %s133
    %s134 = sphi 0, %s131
    %s135 = sphi 0, %s134
    %s151 = sphi 0, %s135
    %s157 = sphi 0, %s159
    %s160 = sphi 0, %s157
    %s161 = sphi 0, %s160
    %s177 = sphi 0, %s161
    %s183 = sphi 0, %s185
    %s186 = sphi 0, %s183
    %s187 = sphi 0, %s186
    %s203 = sphi 0, %s187
    %s209 = sphi 0, %s211
    %s212 = sphi 0, %s209
    %s213 = sphi 0, %s212
    %s229 = sphi 0, %s213
    %s235 = sphi 0, %s237
    %s238 = sphi 0, %s235
    %s239 = sphi 0, %s238
    %s255 = sphi 0, %s239
    %s265 = sphi 0, %s267
    %s268 = sphi 0, %s265
    %s269 = sphi 0, %s268
    %s285 = sphi 0, %s269
  $region4: #{encoder_forward.2} parent=0 // loop_header_branch
    %18 = sbr.rel (%p16) target = $region8
  $region5: #{encoder_forward.2} parent=0 // loop_body
    %s20 = ssub.s32 %s15, 1
    %s21 = ssub.s32 %s15, 2
    %s28 = sadd.s32 1, %s23
    %p29 = scmp.ge.s32.totalorder %s28, 4
    %s30 = scalar_select %p29, 0, %s28
    %s31 = sadd.s32 1, %s22
    %s32 = scalar_select %p29, %s31, %s22
    %p33 = scmp.ge.s32.totalorder %s32, 2
    %s34 = scalar_select %p33, 0, %s32
    %s35 = ssub.s32 %s22, %s34
    %p36 = scmp.eq.s32.totalorder %s35, 0
    %s38 = sadd.s32 %s37, 1
    %s39 = scalar_select %p36, %s37, %s38
    %p42 = pneg %p36
    %p43 = scmp.eq.s32.totalorder %s15, 7
    %p44 = por %p42, %p43
    %p45 = scmp.ne.s32.totalorder %s37, %s40
    %p46 = scmp.eq.s32.totalorder %s15, 0
    %p47 = por %p45, %p46
    %p48 = scmp.ne.s32.totalorder %s37, %s40
    %p49 = scmp.eq.s32.totalorder %s20, 7
    %p50 = por %p48, %p49
    %p51 = scmp.ne.s32.totalorder %s40, %s41
    %p52 = scmp.eq.s32.totalorder %s20, 0
    %p53 = por %p51, %p52
    %p54 = scmp.ne.s32.totalorder %s40, %s41
    %p55 = scmp.eq.s32.totalorder %s21, 7
    %p56 = por %p54, %p55
    %p58 = scmp.ne.s32.totalorder %s41, %s57
    %p59 = scmp.eq.s32.totalorder %s21, 0
    %p60 = por %p58, %p59
    %s62 = sadd.s32 %s61, 1
    %p65 = scmp.eq.s32.totalorder %s15, 7
    %p66 = scmp.ne.s32.totalorder %s61, %s63
    %p67 = scmp.eq.s32.totalorder %s15, 0
    %p68 = por %p66, %p67
    %p69 = scmp.ne.s32.totalorder %s61, %s63
    %p70 = scmp.eq.s32.totalorder %s20, 7
    %p71 = por %p69, %p70
    %p72 = scmp.ne.s32.totalorder %s63, %s64
    %p73 = scmp.eq.s32.totalorder %s20, 0
    %p74 = por %p72, %p73
    %p75 = scmp.ne.s32.totalorder %s63, %s64
    %p76 = scmp.eq.s32.totalorder %s21, 7
    %p77 = por %p75, %p76
    %p79 = scmp.ne.s32.totalorder %s64, %s78
    %p80 = scmp.eq.s32.totalorder %s21, 0
    %p81 = por %p79, %p80
    %s83 = sadd.s32 %s82, 1
    %p86 = scmp.eq.s32.totalorder %s15, 7
    %p87 = scmp.ne.s32.totalorder %s82, %s84
    %p88 = scmp.eq.s32.totalorder %s15, 0
    %p89 = por %p87, %p88
    %p90 = scmp.ne.s32.totalorder %s82, %s84
    %p91 = scmp.eq.s32.totalorder %s20, 7
    %p92 = por %p90, %p91
    %p93 = scmp.ne.s32.totalorder %s84, %s85
    %p94 = scmp.eq.s32.totalorder %s20, 0
    %p95 = por %p93, %p94
    %p96 = scmp.ne.s32.totalorder %s84, %s85
    %p97 = scmp.eq.s32.totalorder %s21, 7
    %p98 = por %p96, %p97
    %p100 = scmp.ne.s32.totalorder %s85, %s99
    %p101 = scmp.eq.s32.totalorder %s21, 0
    %p102 = por %p100, %p101
    %s103 = ssub.s32 %s23, %s30
    %p104 = scmp.eq.s32.totalorder %s103, 0
    %s106 = sadd.s32 %s105, 1
    %s107 = scalar_select %p104, %s105, %s106
    %p110 = pneg %p104
    %p111 = scmp.eq.s32.totalorder %s15, 7
    %p112 = por %p110, %p111
    %p113 = scmp.ne.s32.totalorder %s105, %s108
    %p114 = scmp.eq.s32.totalorder %s15, 0
    %p115 = por %p113, %p114
    %p116 = scmp.ne.s32.totalorder %s105, %s108
    %p117 = scmp.eq.s32.totalorder %s20, 7
    %p118 = por %p116, %p117
    %p119 = scmp.ne.s32.totalorder %s108, %s109
    %p120 = scmp.eq.s32.totalorder %s20, 0
    %p121 = por %p119, %p120
    %p122 = scmp.ne.s32.totalorder %s108, %s109
    %p123 = scmp.eq.s32.totalorder %s21, 7
    %p124 = por %p122, %p123
    %p126 = scmp.ne.s32.totalorder %s109, %s125
    %p127 = scmp.eq.s32.totalorder %s21, 0
    %p128 = por %p126, %p127
    %s129 = ssub.s32 %s23, %s30
    %p130 = scmp.eq.s32.totalorder %s129, 0
    %s132 = sadd.s32 %s131, 1
    %s133 = scalar_select %p130, %s131, %s132
    %p136 = pneg %p130
    %p137 = scmp.eq.s32.totalorder %s15, 7
    %p138 = por %p136, %p137
    %p139 = scmp.ne.s32.totalorder %s131, %s134
    %p140 = scmp.eq.s32.totalorder %s15, 0
    %p141 = por %p139, %p140
    %p142 = scmp.ne.s32.totalorder %s131, %s134
    %p143 = scmp.eq.s32.totalorder %s20, 7
    %p144 = por %p142, %p143
    %p145 = scmp.ne.s32.totalorder %s134, %s135
    %p146 = scmp.eq.s32.totalorder %s20, 0
    %p147 = por %p145, %p146
    %p148 = scmp.ne.s32.totalorder %s134, %s135
    %p149 = scmp.eq.s32.totalorder %s21, 7
    %p150 = por %p148, %p149
    %p152 = scmp.ne.s32.totalorder %s135, %s151
    %p153 = scmp.eq.s32.totalorder %s21, 0
    %p154 = por %p152, %p153
    %s155 = ssub.s32 %s23, %s30
    %p156 = scmp.eq.s32.totalorder %s155, 0
    %s158 = sadd.s32 %s157, 1
    %s159 = scalar_select %p156, %s157, %s158
    %p162 = pneg %p156
    %p163 = scmp.eq.s32.totalorder %s15, 7
    %p164 = por %p162, %p163
    %p165 = scmp.ne.s32.totalorder %s157, %s160
    %p166 = scmp.eq.s32.totalorder %s15, 0
    %p167 = por %p165, %p166
    %p168 = scmp.ne.s32.totalorder %s157, %s160
    %p169 = scmp.eq.s32.totalorder %s20, 7
    %p170 = por %p168, %p169
    %p171 = scmp.ne.s32.totalorder %s160, %s161
    %p172 = scmp.eq.s32.totalorder %s20, 0
    %p173 = por %p171, %p172
    %p174 = scmp.ne.s32.totalorder %s160, %s161
    %p175 = scmp.eq.s32.totalorder %s21, 7
    %p176 = por %p174, %p175
    %p178 = scmp.ne.s32.totalorder %s161, %s177
    %p179 = scmp.eq.s32.totalorder %s21, 0
    %p180 = por %p178, %p179
    %s181 = ssub.s32 %s23, %s30
    %p182 = scmp.eq.s32.totalorder %s181, 0
    %s184 = sadd.s32 %s183, 1
    %s185 = scalar_select %p182, %s183, %s184
    %p188 = pneg %p182
    %p189 = scmp.eq.s32.totalorder %s15, 7
    %p190 = por %p188, %p189
    %p191 = scmp.ne.s32.totalorder %s183, %s186
    %p192 = scmp.eq.s32.totalorder %s15, 0
    %p193 = por %p191, %p192
    %p194 = scmp.ne.s32.totalorder %s183, %s186
    %p195 = scmp.eq.s32.totalorder %s20, 7
    %p196 = por %p194, %p195
    %p197 = scmp.ne.s32.totalorder %s186, %s187
    %p198 = scmp.eq.s32.totalorder %s20, 0
    %p199 = por %p197, %p198
    %p200 = scmp.ne.s32.totalorder %s186, %s187
    %p201 = scmp.eq.s32.totalorder %s21, 7
    %p202 = por %p200, %p201
    %p204 = scmp.ne.s32.totalorder %s187, %s203
    %p205 = scmp.eq.s32.totalorder %s21, 0
    %p206 = por %p204, %p205
    %s207 = ssub.s32 %s23, %s30
    %p208 = scmp.eq.s32.totalorder %s207, 0
    %s210 = sadd.s32 %s209, 1
    %s211 = scalar_select %p208, %s209, %s210
    %p214 = pneg %p208
    %p215 = scmp.eq.s32.totalorder %s15, 7
    %p216 = por %p214, %p215
    %p217 = scmp.ne.s32.totalorder %s209, %s212
    %p218 = scmp.eq.s32.totalorder %s15, 0
    %p219 = por %p217, %p218
    %p220 = scmp.ne.s32.totalorder %s209, %s212
    %p221 = scmp.eq.s32.totalorder %s20, 7
    %p222 = por %p220, %p221
    %p223 = scmp.ne.s32.totalorder %s212, %s213
    %p224 = scmp.eq.s32.totalorder %s20, 0
    %p225 = por %p223, %p224
    %p226 = scmp.ne.s32.totalorder %s212, %s213
    %p227 = scmp.eq.s32.totalorder %s21, 7
    %p228 = por %p226, %p227
    %p230 = scmp.ne.s32.totalorder %s213, %s229
    %p231 = scmp.eq.s32.totalorder %s21, 0
    %p232 = por %p230, %p231
    %s233 = ssub.s32 %s23, %s30
    %p234 = scmp.eq.s32.totalorder %s233, 0
    %s236 = sadd.s32 %s235, 1
    %s237 = scalar_select %p234, %s235, %s236
    %p240 = pneg %p234
    %p241 = scmp.eq.s32.totalorder %s15, 7
    %p242 = por %p240, %p241
    %p243 = scmp.ne.s32.totalorder %s235, %s238
    %p244 = scmp.eq.s32.totalorder %s15, 0
    %p245 = por %p243, %p244
    %p246 = scmp.ne.s32.totalorder %s235, %s238
    %p247 = scmp.eq.s32.totalorder %s20, 7
    %p248 = por %p246, %p247
    %p249 = scmp.ne.s32.totalorder %s238, %s239
    %p250 = scmp.eq.s32.totalorder %s20, 0
    %p251 = por %p249, %p250
    %p252 = scmp.ne.s32.totalorder %s238, %s239
    %p253 = scmp.eq.s32.totalorder %s21, 7
    %p254 = por %p252, %p253
    %p256 = scmp.ne.s32.totalorder %s239, %s255
    %p257 = scmp.eq.s32.totalorder %s21, 0
    %p258 = por %p256, %p257
    %s259 = smul.u32 %s22, 4
    %s260 = sadd.s32 %s259, %s23
    %s261 = smul.u32 %s34, 4
    %s262 = sadd.s32 %s261, %s30
    %s263 = ssub.s32 %s260, %s262
    %p264 = scmp.eq.s32.totalorder %s263, 0
    %s266 = sadd.s32 %s265, 1
    %s267 = scalar_select %p264, %s265, %s266
    %p270 = pneg %p264
    %p271 = scmp.eq.s32.totalorder %s15, 7
    %p272 = por %p270, %p271
    %p273 = scmp.ne.s32.totalorder %s265, %s268
    %p274 = scmp.eq.s32.totalorder %s15, 0
    %p275 = por %p273, %p274
    %p276 = scmp.ne.s32.totalorder %s265, %s268
    %p277 = scmp.eq.s32.totalorder %s20, 7
    %p278 = por %p276, %p277
    %p279 = scmp.ne.s32.totalorder %s268, %s269
    %p280 = scmp.eq.s32.totalorder %s20, 0
    %p281 = por %p279, %p280
    %p282 = scmp.ne.s32.totalorder %s268, %s269
    %p283 = scmp.eq.s32.totalorder %s21, 7
    %p284 = por %p282, %p283
    %p286 = scmp.ne.s32.totalorder %s269, %s285
    %p287 = scmp.eq.s32.totalorder %s21, 0
    %p288 = por %p286, %p287
    %p289 = scmp.le.s32.totalorder 1, %s15
    %p290 = scmp.lt.s32.totalorder %s15, 9
    %p291 = pnand %p289, %p290
    %p292 = pneg %p291
    // Predicated region
    $region9: #{encoder_forward.2} parent=5 // pred_check
      _
    $region10: #{encoder_forward.2} parent=5 // pred_check_branch
      %294 = sbr.rel (%p291) target = $region12
    $region11: #{encoder_forward.2} parent=5 // pred_region
      %s295 = ssub.s32 %s15, 1
      // Predicated region
      $region13: #{encoder_forward.2} parent=11 // pred_check
        %p296 = pneg %p74
      $region14: #{encoder_forward.2} parent=11 // pred_check_branch
        %298 = sbr.rel (%p296) target = $region16
      $region15: #{encoder_forward.2} parent=11 // pred_region
        _
      $region16: #{encoder_forward.2} parent=11 // pred_fallthru
        _
      // Predicated region
      $region17: #{encoder_forward.2} parent=11 // pred_check
        %p299 = pneg %p95
      $region18: #{encoder_forward.2} parent=11 // pred_check_branch
        %301 = sbr.rel (%p299) target = $region20
      $region19: #{encoder_forward.2} parent=11 // pred_region
        _
      $region20: #{encoder_forward.2} parent=11 // pred_fallthru
        _
    $region12: #{encoder_forward.2} parent=5 // pred_fallthru
      _
    %p302 = scmp.lt.s32.totalorder %s15, 8
    // Predicated region
    $region21: #{encoder_forward.2} parent=5 // pred_check
      %p303 = pneg %p302
    $region22: #{encoder_forward.2} parent=5 // pred_check_branch
      %305 = sbr.rel (%p303) target = $region24
    $region23: #{encoder_forward.2} parent=5 // pred_region
      // Predicated region
      $region25: #{encoder_forward.2} parent=23 // pred_check
        %p306 = pneg %p47
      $region26: #{encoder_forward.2} parent=23 // pred_check_branch
        %308 = sbr.rel (%p306) target = $region28
      $region27: #{encoder_forward.2} parent=23 // pred_region
        %p309 = scmp.lt.s32.totalorder %s22, 1
        %s310 = scalar_select %p309, %s22, 1
        %s311 = smul.addr %s310, 8
        %s312 = scalar_lea.vmem %s0, %s311
      $region28: #{encoder_forward.2} parent=23 // pred_fallthru
        _
      // Predicated region
      $region29: #{encoder_forward.2} parent=23 // pred_check
        %p313 = pneg %p115
      $region30: #{encoder_forward.2} parent=23 // pred_check_branch
        %315 = sbr.rel (%p313) target = $region32
      $region31: #{encoder_forward.2} parent=23 // pred_region
        %p316 = scmp.lt.s32.totalorder %s23, 3
        %s317 = scalar_select %p316, %s23, 3
        %s318 = smul.addr %s317, 4
        %s319 = smul.addr %s318, 4
        %s320 = scalar_lea.vmem %s3, %s319
      $region32: #{encoder_forward.2} parent=23 // pred_fallthru
        _
      // Predicated region
      $region33: #{encoder_forward.2} parent=23 // pred_check
        %p321 = pneg %p141
      $region34: #{encoder_forward.2} parent=23 // pred_check_branch
        %323 = sbr.rel (%p321) target = $region36
      $region35: #{encoder_forward.2} parent=23 // pred_region
        %p324 = scmp.lt.s32.totalorder %s23, 3
        %s325 = scalar_select %p324, %s23, 3
        %s326 = scalar_lea.vmem %s4, %s325
      $region36: #{encoder_forward.2} parent=23 // pred_fallthru
        _
      // Predicated region
      $region37: #{encoder_forward.2} parent=23 // pred_check
        %p327 = pneg %p167
      $region38: #{encoder_forward.2} parent=23 // pred_check_branch
        %329 = sbr.rel (%p327) target = $region40
      $region39: #{encoder_forward.2} parent=23 // pred_region
        %p330 = scmp.lt.s32.totalorder %s23, 3
        %s331 = scalar_select %p330, %s23, 3
        %s332 = smul.addr %s331, 4
        %s333 = smul.addr %s332, 4
        %s334 = scalar_lea.vmem %s5, %s333
      $region40: #{encoder_forward.2} parent=23 // pred_fallthru
        _
      // Predicated region
      $region41: #{encoder_forward.2} parent=23 // pred_check
        %p335 = pneg %p193
      $region42: #{encoder_forward.2} parent=23 // pred_check_branch
        %337 = sbr.rel (%p335) target = $region44
      $region43: #{encoder_forward.2} parent=23 // pred_region
        %p338 = scmp.lt.s32.totalorder %s23, 3
        %s339 = scalar_select %p338, %s23, 3
        %s340 = scalar_lea.vmem %s6, %s339
      $region44: #{encoder_forward.2} parent=23 // pred_fallthru
        _
      // Predicated region
      $region45: #{encoder_forward.2} parent=23 // pred_check
        %p341 = pneg %p219
      $region46: #{encoder_forward.2} parent=23 // pred_check_branch
        %343 = sbr.rel (%p341) target = $region48
      $region47: #{encoder_forward.2} parent=23 // pred_region
        %p344 = scmp.lt.s32.totalorder %s23, 3
        %s345 = scalar_select %p344, %s23, 3
        %s346 = smul.addr %s345, 4
        %s347 = smul.addr %s346, 4
        %s348 = scalar_lea.vmem %s7, %s347
      $region48: #{encoder_forward.2} parent=23 // pred_fallthru
        _
      // Predicated region
      $region49: #{encoder_forward.2} parent=23 // pred_check
        %p349 = pneg %p245
      $region50: #{encoder_forward.2} parent=23 // pred_check_branch
        %351 = sbr.rel (%p349) target = $region52
      $region51: #{encoder_forward.2} parent=23 // pred_region
        %p352 = scmp.lt.s32.totalorder %s23, 3
        %s353 = scalar_select %p352, %s23, 3
        %s354 = scalar_lea.vmem %s8, %s353
      $region52: #{encoder_forward.2} parent=23 // pred_fallthru
        _
    $region24: #{encoder_forward.2} parent=5 // pred_fallthru
      _
    %p355 = scmp.le.s32.totalorder 1, %s15
    %p356 = scmp.lt.s32.totalorder %s15, 9
    %p357 = pnand %p355, %p356
    %p358 = pneg %p357
    // Predicated region
    $region53: #{encoder_forward.2} parent=5 // pred_check
      _
    $region54: #{encoder_forward.2} parent=5 // pred_check_branch
      %360 = sbr.rel (%p357) target = $region56
    $region55: #{encoder_forward.2} parent=5 // pred_region
      %s361 = ssub.s32 %s15, 1
      %p362 = scmp.lt.s32.totalorder %s24, 1
      %s363 = scalar_select %p362, %s24, 1
      %s364 = smul.addr %s363, 8
      %s365 = scalar_lea.vmem %s0, %s364
      %p366 = pneg %p53
      %p367 = pneg %p50
      %p368 = pneg %p74
      %p369 = pneg %p71
      %p370 = pneg %p95
      %p371 = pneg %p92
      %p372 = scmp.lt.s32.totalorder %s25, 3
      %s373 = scalar_select %p372, %s25, 3
      %s374 = smul.addr %s373, 4
      %s375 = smul.addr %s374, 4
      %s376 = scalar_lea.vmem %s3, %s375
      %p377 = pneg %p121
      %p378 = pneg %p118
      %p379 = scmp.lt.s32.totalorder %s25, 3
      %s380 = scalar_select %p379, %s25, 3
      %s381 = scalar_lea.vmem %s4, %s380
      %p382 = pneg %p147
      %p383 = pneg %p144
      %p384 = scmp.lt.s32.totalorder %s25, 3
      %s385 = scalar_select %p384, %s25, 3
      %s386 = smul.addr %s385, 4
      %s387 = smul.addr %s386, 4
      %s388 = scalar_lea.vmem %s5, %s387
      %p389 = pneg %p173
      %p390 = pneg %p170
      %p391 = scmp.lt.s32.totalorder %s25, 3
      %s392 = scalar_select %p391, %s25, 3
      %s393 = scalar_lea.vmem %s6, %s392
      %p394 = pneg %p199
      %p395 = pneg %p196
      %p396 = scmp.lt.s32.totalorder %s25, 3
      %s397 = scalar_select %p396, %s25, 3
      %s398 = smul.addr %s397, 4
      %s399 = smul.addr %s398, 4
      %s400 = scalar_lea.vmem %s7, %s399
      %p401 = pneg %p225
      %p402 = pneg %p222
      %p403 = scmp.lt.s32.totalorder %s25, 3
      %s404 = scalar_select %p403, %s25, 3
      %s405 = scalar_lea.vmem %s8, %s404
      %p406 = pneg %p251
      %p407 = pneg %p248
      %p408 = pneg %p281
      %p409 = pneg %p278
      %s410 = smul.u32 %s24, 4
      %s411 = sadd.s32 %s410, %s25
      %p412 = scmp.lt.s32.totalorder %s411, 7
      %s413 = scalar_select %p412, %s411, 7
      %s414 = smul.addr %s413, 4
      %s415 = scalar_lea.vmem %s9, %s414
      %p416 = scmp.lt.s32.totalorder %s24, 1
      %s417 = scalar_select %p416, %s24, 1
      %s418 = smul.addr %s417, 8
      %s419 = scalar_lea.vmem %s0, %s418
      %p420 = scmp.lt.s32.totalorder %s25, 3
      %s421 = scalar_select %p420, %s25, 3
      %s422 = smul.addr %s421, 4
      %s423 = smul.addr %s422, 4
      %s424 = scalar_lea.vmem %s3, %s423
      %p425 = scmp.lt.s32.totalorder %s25, 3
      %s426 = scalar_select %p425, %s25, 3
      %s427 = scalar_lea.vmem %s4, %s426
      %p428 = scmp.lt.s32.totalorder %s25, 3
      %s429 = scalar_select %p428, %s25, 3
      %s430 = smul.addr %s429, 4
      %s431 = smul.addr %s430, 4
      %s432 = scalar_lea.vmem %s5, %s431
      %p433 = scmp.lt.s32.totalorder %s25, 3
      %s434 = scalar_select %p433, %s25, 3
      %s435 = scalar_lea.vmem %s6, %s434
      %p436 = scmp.lt.s32.totalorder %s25, 3
      %s437 = scalar_select %p436, %s25, 3
      %s438 = smul.addr %s437, 4
      %s439 = smul.addr %s438, 4
      %s440 = scalar_lea.vmem %s7, %s439
      %p441 = scmp.lt.s32.totalorder %s25, 3
      %s442 = scalar_select %p441, %s25, 3
      %s443 = scalar_lea.vmem %s8, %s442
      %s444 = smul.u32 %s24, 4
      %s445 = sadd.s32 %s444, %s25
      %p446 = scmp.lt.s32.totalorder %s445, 7
      %s447 = scalar_select %p446, %s445, 7
      %s448 = smul.addr %s447, 4
      %s449 = scalar_lea.vmem %s9, %s448
      %s450 = smul.u32 %s24, 4
      %s451 = sadd.s32 %s450, %s25
      %v453 = vld [vmem:[%s419] sm:$0xff]
      %vm454 = vcmask 261120
      %v455 = vsel %vm454, %v453, 0.0
      %456 = vadd.xlane.f32.xlu0 %v455
      %v457 = vpop.xlane.xlu0 %456
      %v458 = vrcp.pop 32.0
      %v459 = vmul.f32 32.0, %v458
      %v460 = vsub.f32 1.0, %v459
      %v461 = vmul.f32 %v458, %v460
      %v462 = vadd.f32 %v458, %v461
      %vm463 = vweird.f32 %v458
      %v464 = vsel %vm463, %v458, %v462
      %v465 = vmul.f32 %v457, %v464
      %v466 = vsub.f32 %v453, %v465
      %v467 = vmul.f32 %v466, %v466
      %v468 = vsel %vm454, %v467, 0.0
      %469 = vadd.xlane.f32.xlu0 %v468
      %v470 = vpop.xlane.xlu0 %469
      %v471 = vmul.f32 %v470, %v464
      %v472 = vadd.f32 %v471, 1e-05
      %v473 = vrsqrt.pop %v472
      %v474 = vmul.f32 %v473, %v472
      %v475 = vmul.f32 %v474, %v473
      %v476 = vmul.f32 0.5, %v475
      %v477 = vsub.f32 1.5, %v476
      %v478 = vmul.f32 %v473, %v477
      %vm479 = vweird.f32 %v472
      %vm480 = vweird.f32 %v473
      %vm481 = vmor %vm479, %vm480
      %v482 = vsel %vm481, %v473, %v478
      %v483 = vmul.f32 %v466, %v482
      %v484 = vld [vmem:[%s1] sm:$0x1]
      %v486 = vperm.slane %v484, 0
      %v488 = vmul.f32 %v483, %v486
      %v489 = vld [vmem:[%s2] sm:$0x1]
      %v491 = vperm.slane %v489, 0
      %v493 = vadd.f32 %v488, %v491
      %v494 = vpack.c.bf16 %v493, %v493
      %v495 = vld [vmem:[%s424] sm:$0xf]
      %v496 = vld [vmem:[%s424 + $0x4] sm:$0xf]
      %v497 = vld [vmem:[%s424 + $0x8] sm:$0xf]
      %v498 = vld [vmem:[%s424 + $0xc] sm:$0xf]
      %v499 = vld [vmem:[%s427] sm:$0x1]
      %v501 = vperm.slane %v499, 0
      %v507 = vunpack.c.l.b16 %v495
      %v508 = vunpack.c.l.b16 %v496
      %v509 = vunpack.c.l.b16 %v497
      %v510 = vunpack.c.l.b16 %v498
      %v511 = vpack.c.b16 %v508, %v507
      %v512 = vpack.c.b16 %v510, %v509
      %v516 = vsel %vm454, %v494, 0
      %518 = vmatpush.bf16.msra.mxu0 0
      %519 = vmatpush.bf16.msra.mxu0 0
      %520 = vmatpush.bf16.msra.mxu0 0
      %521 = vmatpush.bf16.msra.mxu0 0
      %522 = vmatpush.bf16.msra.mxu0 0
      %523 = vmatpush.bf16.msra.mxu0 0
      %524 = vmatpush.bf16.msra.mxu0 %v512
      %525 = vmatpush.bf16.msra.mxu0 %v511
      %526 = vmatmul.bf16.gmra.mxu0 %v516
      %v527 = vpop.f32.mrf.mxu0
      %v528 = vadd.f32 %v501, %v527
      %v529 = vpop.f32.mrf.mxu0
      %530 = vdwg.mxu0
      %v531 = vld [vmem:[%s432] sm:$0xf]
      %v532 = vld [vmem:[%s432 + $0x4] sm:$0xf]
      %v533 = vld [vmem:[%s432 + $0x8] sm:$0xf]
      %v534 = vld [vmem:[%s432 + $0xc] sm:$0xf]
      %v535 = vld [vmem:[%s435] sm:$0x1]
      %v537 = vperm.slane %v535, 0
      %v543 = vunpack.c.l.b16 %v531
      %v544 = vunpack.c.l.b16 %v532
      %v545 = vunpack.c.l.b16 %v533
      %v546 = vunpack.c.l.b16 %v534
      %v547 = vpack.c.b16 %v544, %v543
      %v548 = vpack.c.b16 %v546, %v545
      %551 = vmatpush.bf16.msra.mxu0 0
      %552 = vmatpush.bf16.msra.mxu0 0
      %553 = vmatpush.bf16.msra.mxu0 0
      %554 = vmatpush.bf16.msra.mxu0 0
      %555 = vmatpush.bf16.msra.mxu0 0
      %556 = vmatpush.bf16.msra.mxu0 0
      %557 = vmatpush.bf16.msra.mxu0 %v548
      %558 = vmatpush.bf16.msra.mxu0 %v547
      %559 = vmatmul.bf16.gmra.mxu0 %v516
      %v560 = vpop.f32.mrf.mxu0
      %v561 = vadd.f32 %v537, %v560
      %v562 = vpop.f32.mrf.mxu0
      %563 = vdwg.mxu0
      %v564 = vld [vmem:[%s440] sm:$0xf]
      %v565 = vld [vmem:[%s440 + $0x4] sm:$0xf]
      %v566 = vld [vmem:[%s440 + $0x8] sm:$0xf]
      %v567 = vld [vmem:[%s440 + $0xc] sm:$0xf]
      %v568 = vld [vmem:[%s443] sm:$0x1]
      %v570 = vperm.slane %v568, 0
      %v576 = vunpack.c.l.b16 %v564
      %v577 = vunpack.c.l.b16 %v565
      %v578 = vunpack.c.l.b16 %v566
      %v579 = vunpack.c.l.b16 %v567
      %v580 = vpack.c.b16 %v577, %v576
      %v581 = vpack.c.b16 %v579, %v578
      %584 = vmatpush.bf16.msra.mxu0 0
      %585 = vmatpush.bf16.msra.mxu0 0
      %586 = vmatpush.bf16.msra.mxu0 0
      %587 = vmatpush.bf16.msra.mxu0 0
      %588 = vmatpush.bf16.msra.mxu0 0
      %589 = vmatpush.bf16.msra.mxu0 0
      %590 = vmatpush.bf16.msra.mxu0 %v581
      %591 = vmatpush.bf16.msra.mxu0 %v580
      %592 = vmatmul.bf16.gmra.mxu0 %v516
      %v593 = vpop.f32.mrf.mxu0
      %v594 = vadd.f32 %v570, %v593
      %v595 = vpop.f32.mrf.mxu0
      %596 = vdwg.mxu0
      %v597 = vpack.c.bf16 %v528, %v528
      %v598 = vpack.c.bf16 %v561, %v561
      %vm599 = vcmask 64512
      %v601 = vsel %vm599, %v597, 0
      %v604 = vsel %vm599, %v598, 0
      %606 = vmatpush.bf16.xpose.msra.mxu0 0
      %607 = vmatpush.bf16.xpose.msra.mxu0 0
      %608 = vmatpush.bf16.xpose.msra.mxu0 0
      %609 = vmatpush.bf16.xpose.msra.mxu0 0
      %610 = vmatpush.bf16.xpose.msra.mxu0 0
      %611 = vmatpush.bf16.xpose.msra.mxu0 0
      %612 = vmatpush.bf16.xpose.msra.mxu0 0
      %613 = vmatpush.bf16.xpose.msra.mxu0 %v604
      %614 = vmatmul.bf16.gmra.mxu0 %v601
      %v615 = vpop.f32.mrf.mxu0
      %v616 = vadd.f32 0.0, %v615
      %v617 = vpop.f32.mrf.mxu0
      %618 = vdwg.mxu0
      %v619 = vsel %vm599, %v616, -inf
      %620 = vmax.xlane.f32.xlu0 %v619
      %v621 = vpop.xlane.xlu0 %620
      %v622 = vsub.f32 %v616, %v621
      %v623 = vmul.f32 %v622, 1.442695
      %v624 = vpow.pop %v623
      %v625 = vsel %vm599, %v624, 0.0
      %626 = vadd.xlane.f32.xlu0 %v625
      %v627 = vpop.xlane.xlu0 %626
      %v628 = vrcp.pop %v627
      %v629 = vmul.f32 %v624, %v628
      %v630 = vpack.c.bf16 %v629, %v629
      %v631 = vpack.c.bf16 %v594, %v594
      %v633 = vsel %vm599, %v630, 0
      %vm635 = vcmask 1043456
      %v637 = vsel %vm635, %v631, 0
      %639 = vmatpush.bf16.msra.mxu0 0
      %640 = vmatpush.bf16.msra.mxu0 0
      %641 = vmatpush.bf16.msra.mxu0 0
      %642 = vmatpush.bf16.msra.mxu0 0
      %643 = vmatpush.bf16.msra.mxu0 0
      %644 = vmatpush.bf16.msra.mxu0 0
      %645 = vmatpush.bf16.msra.mxu0 0
      %646 = vmatpush.bf16.msra.mxu0 %v637
      %647 = vmatmul.bf16.gmra.mxu0 %v633
      %v648 = vpop.f32.mrf.mxu0
      %v649 = vadd.f32 0.0, %v648
      %v650 = vpop.f32.mrf.mxu0
      %651 = vdwg.mxu0
      %v652 = vpack.c.bf16 %v649, %v649
      %vm653 = vcmask 60416
      %654 = vst.msk [vmem:[%s449] sm:$0xf] %vm653, %v652
      %s655 = smul.u32 %s24, 4
      %s656 = sadd.s32 %s655, %s25
      %p657 = scmp.lt.s32.totalorder %s656, 7
      %s658 = scalar_select %p657, %s656, 7
      %s659 = smul.addr %s658, 4
      %s660 = scalar_lea.vmem %s9, %s659
      // Predicated region
      $region57: #{encoder_forward.2} parent=55 // pred_check
        %p661 = pneg %p278
      $region58: #{encoder_forward.2} parent=55 // pred_check_branch
        %663 = sbr.rel (%p661) target = $region60
      $region59: #{encoder_forward.2} parent=55 // pred_region
        %s664 = smul.u32 %s24, 4
        %s665 = sadd.s32 %s664, %s25
      $region60: #{encoder_forward.2} parent=55 // pred_fallthru
        _
    $region56: #{encoder_forward.2} parent=5 // pred_fallthru
      _
    %p666 = scmp.le.s32.totalorder 2, %s15
    // Predicated region
    $region61: #{encoder_forward.2} parent=5 // pred_check
      %p667 = pneg %p666
    $region62: #{encoder_forward.2} parent=5 // pred_check_branch
      %669 = sbr.rel (%p667) target = $region64
    $region63: #{encoder_forward.2} parent=5 // pred_region
      %s670 = ssub.s32 %s15, 2
      // Predicated region
      $region65: #{encoder_forward.2} parent=63 // pred_check
        %p671 = pneg %p284
      $region66: #{encoder_forward.2} parent=63 // pred_check_branch
        %673 = sbr.rel (%p671) target = $region68
      $region67: #{encoder_forward.2} parent=63 // pred_region
        %s674 = smul.u32 %s26, 4
        %s675 = sadd.s32 %s674, %s27
        %p676 = scmp.lt.s32.totalorder %s675, 7
        %s677 = scalar_select %p676, %s675, 7
        %s678 = smul.addr %s677, 4
        %s679 = scalar_lea.vmem %s9, %s678
      $region68: #{encoder_forward.2} parent=63 // pred_fallthru
        _
    $region64: #{encoder_forward.2} parent=5 // pred_fallthru
      _
  $region6: #{encoder_forward.2} parent=0 // loop_footer
    %s19 = sadd.s32 1, %s15
  $region7: #{encoder_forward.2} parent=0 // loop_footer_branch
    %14 = sbr.rel target = $region3
  $region8: #{encoder_forward.2} parent=0 // loop_exit
    _

// kernel: encoder_forward.3
$region0: #{encoder_forward.3}
  #allocation0 [shape = 'u32[]', space=smem, size = 0x4, offset = 0x4, fixed_abs, tag = 'smem constant byte address 0x4 - core index']
  #allocation1 [shape = 'u32[72,128]{1,0:T(1,128)}', space=vmem, size = 0x9000, scoped, tag = 'internal scratch']
  %s0 = inlined_call_operand.vmem [shape: bf16[2,8,32], index: 0, kind: input, shape index: {}]
  %s1 = inlined_call_operand.vmem [shape: f32[2,8,32], index: 1, kind: input, shape index: {}]
  %s2 = inlined_call_operand.vmem [shape: bf16[32,32], index: 2, kind: input, shape index: {}]
  %s3 = inlined_call_operand.vmem [shape: f32[1,32], index: 3, kind: input, shape index: {}]
  %s4 = inlined_call_operand.vmem [shape: f32[1,32], index: 4, kind: input, shape index: {}]
  %s5 = inlined_call_operand.vmem [shape: f32[1,32], index: 5, kind: input, shape index: {}]
  %s6 = inlined_call_operand.vmem [shape: bf16[32,128], index: 6, kind: input, shape index: {}]
  %s7 = inlined_call_operand.vmem [shape: f32[1,128], index: 7, kind: input, shape index: {}]
  %s8 = inlined_call_operand.vmem [shape: bf16[128,32], index: 8, kind: input, shape index: {}]
  %s9 = inlined_call_operand.vmem [shape: f32[1,32], index: 9, kind: input, shape index: {}]
  %s10 = inlined_call_operand.hbm [shape: f32[2,8,32], index: 10, kind: output, shape index: {}]
  %s11 = sld [smem:[#allocation0]]
  $region73: #{encoder_forward.3} parent=0
    _
  %s13 = ssub.s32 1, %s11
  %s14 = scalar_select 0, %s13, %s11
  $region1: #{encoder_forward.3} parent=0
    #allocation2 [shape = 'u8[8192]{0}', space=vmem, size = 0x2000, scoped, tag = 'output window, operand 0']
    #allocation3 [shape = 's32[2]{0}', space=sflag, size = 0x8, scoped, tag = 'scoped memory for encoder_forward.3']
    %15 = vsyncpa [#allocation3], 0
    %s16 = scalar_lea.sflag [#allocation3], 1
    %17 = vsyncpa %s16, 0
    loop: start=0, step=1, limit=4
    $region2: #{encoder_forward.3} parent=1 // loop_pre_header
      _
    $region3: #{encoder_forward.3} parent=1 // loop_header
      %s19 = sphi 0, %s23
      %p20 = scmp.ge.s32.totalorder %s19, 4
      %s29 = sphi 0, %s31
      %s32 = sphi 0, %s29
      %s33 = sphi 0, %s32
      %s49 = sphi 0, %s33
      %s55 = sphi 0, %s57
      %s58 = sphi 0, %s55
      %s59 = sphi 0, %s58
      %s75 = sphi 0, %s59
      %s79 = sphi 0, %s79
      %s81 = sphi 0, %s79
      %s82 = sphi 0, %s81
      %s96 = sphi 0, %s82
      %s100 = sphi 0, %s100
      %s102 = sphi 0, %s100
      %s103 = sphi 0, %s102
      %s117 = sphi 0, %s103
      %s121 = sphi 0, %s121
      %s123 = sphi 0, %s121
      %s124 = sphi 0, %s123
      %s138 = sphi 0, %s124
      %s142 = sphi 0, %s142
      %s144 = sphi 0, %s142
      %s145 = sphi 0, %s144
      %s159 = sphi 0, %s145
      %s163 = sphi 0, %s163
      %s165 = sphi 0, %s163
      %s166 = sphi 0, %s165
      %s180 = sphi 0, %s166
      %s184 = sphi 0, %s184
      %s186 = sphi 0, %s184
      %s187 = sphi 0, %s186
      %s201 = sphi 0, %s187
      %s205 = sphi 0, %s205
      %s207 = sphi 0, %s205
      %s208 = sphi 0, %s207
      %s222 = sphi 0, %s208
      %s226 = sphi 0, %s226
      %s228 = sphi 0, %s226
      %s229 = sphi 0, %s228
      %s243 = sphi 0, %s229
      %s249 = sphi 0, %s251
      %s252 = sphi 0, %s249
      %s253 = sphi 0, %s252
      %s269 = sphi 0, %s253
    $region4: #{encoder_forward.3} parent=1 // loop_header_branch
      %22 = sbr.rel (%p20) target = $region8
    $region5: #{encoder_forward.3} parent=1 // loop_body
      %s24 = ssub.s32 %s19, 1
      %s25 = ssub.s32 %s19, 2
      %s26 = sadd.s32 %s19, 1
      %s27 = ssub.s32 %s19, %s26
      %p28 = scmp.eq.s32.totalorder %s27, 0
      %s30 = sadd.s32 %s29, 1
      %s31 = scalar_select %p28, %s29, %s30
      %p34 = pneg %p28
      %p35 = scmp.eq.s32.totalorder %s19, 1
      %p36 = por %p34, %p35
      %p37 = scmp.ne.s32.totalorder %s29, %s32
      %p38 = scmp.eq.s32.totalorder %s19, 0
      %p39 = por %p37, %p38
      %p40 = scmp.ne.s32.totalorder %s29, %s32
      %p41 = scmp.eq.s32.totalorder %s24, 1
      %p42 = por %p40, %p41
      %p43 = scmp.ne.s32.totalorder %s32, %s33
      %p44 = scmp.eq.s32.totalorder %s24, 0
      %p45 = por %p43, %p44
      %p46 = scmp.ne.s32.totalorder %s32, %s33
      %p47 = scmp.eq.s32.totalorder %s25, 1
      %p48 = por %p46, %p47
      %p50 = scmp.ne.s32.totalorder %s33, %s49
      %p51 = scmp.eq.s32.totalorder %s25, 0
      %p52 = por %p50, %p51
      %s53 = ssub.s32 %s19, %s26
      %p54 = scmp.eq.s32.totalorder %s53, 0
      %s56 = sadd.s32 %s55, 1
      %s57 = scalar_select %p54, %s55, %s56
      %p60 = pneg %p54
      %p61 = scmp.eq.s32.totalorder %s19, 1
      %p62 = por %p60, %p61
      %p63 = scmp.ne.s32.totalorder %s55, %s58
      %p64 = scmp.eq.s32.totalorder %s19, 0
      %p65 = por %p63, %p64
      %p66 = scmp.ne.s32.totalorder %s55, %s58
      %p67 = scmp.eq.s32.totalorder %s24, 1
      %p68 = por %p66, %p67
      %p69 = scmp.ne.s32.totalorder %s58, %s59
      %p70 = scmp.eq.s32.totalorder %s24, 0
      %p71 = por %p69, %p70
      %p72 = scmp.ne.s32.totalorder %s58, %s59
      %p73 = scmp.eq.s32.totalorder %s25, 1
      %p74 = por %p72, %p73
      %p76 = scmp.ne.s32.totalorder %s59, %s75
      %p77 = scmp.eq.s32.totalorder %s25, 0
      %p78 = por %p76, %p77
      %s80 = sadd.s32 %s79, 1
      %p83 = scmp.eq.s32.totalorder %s19, 1
      %p84 = scmp.ne.s32.totalorder %s79, %s81
      %p85 = scmp.eq.s32.totalorder %s19, 0
      %p86 = por %p84, %p85
      %p87 = scmp.ne.s32.totalorder %s79, %s81
      %p88 = scmp.eq.s32.totalorder %s24, 1
      %p89 = por %p87, %p88
      %p90 = scmp.ne.s32.totalorder %s81, %s82
      %p91 = scmp.eq.s32.totalorder %s24, 0
      %p92 = por %p90, %p91
      %p93 = scmp.ne.s32.totalorder %s81, %s82
      %p94 = scmp.eq.s32.totalorder %s25, 1
      %p95 = por %p93, %p94
      %p97 = scmp.ne.s32.totalorder %s82, %s96
      %p98 = scmp.eq.s32.totalorder %s25, 0
      %p99 = por %p97, %p98
      %s101 = sadd.s32 %s100, 1
      %p104 = scmp.eq.s32.totalorder %s19, 1
      %p105 = scmp.ne.s32.totalorder %s100, %s102
      %p106 = scmp.eq.s32.totalorder %s19, 0
      %p107 = por %p105, %p106
      %p108 = scmp.ne.s32.totalorder %s100, %s102
      %p109 = scmp.eq.s32.totalorder %s24, 1
      %p110 = por %p108, %p109
      %p111 = scmp.ne.s32.totalorder %s102, %s103
      %p112 = scmp.eq.s32.totalorder %s24, 0
      %p113 = por %p111, %p112
      %p114 = scmp.ne.s32.totalorder %s102, %s103
      %p115 = scmp.eq.s32.totalorder %s25, 1
      %p116 = por %p114, %p115
      %p118 = scmp.ne.s32.totalorder %s103, %s117
      %p119 = scmp.eq.s32.totalorder %s25, 0
      %p120 = por %p118, %p119
      %s122 = sadd.s32 %s121, 1
      %p125 = scmp.eq.s32.totalorder %s19, 1
      %p126 = scmp.ne.s32.totalorder %s121, %s123
      %p127 = scmp.eq.s32.totalorder %s19, 0
      %p128 = por %p126, %p127
      %p129 = scmp.ne.s32.totalorder %s121, %s123
      %p130 = scmp.eq.s32.totalorder %s24, 1
      %p131 = por %p129, %p130
      %p132 = scmp.ne.s32.totalorder %s123, %s124
      %p133 = scmp.eq.s32.totalorder %s24, 0
      %p134 = por %p132, %p133
      %p135 = scmp.ne.s32.totalorder %s123, %s124
      %p136 = scmp.eq.s32.totalorder %s25, 1
      %p137 = por %p135, %p136
      %p139 = scmp.ne.s32.totalorder %s124, %s138
      %p140 = scmp.eq.s32.totalorder %s25, 0
      %p141 = por %p139, %p140
      %s143 = sadd.s32 %s142, 1
      %p146 = scmp.eq.s32.totalorder %s19, 1
      %p147 = scmp.ne.s32.totalorder %s142, %s144
      %p148 = scmp.eq.s32.totalorder %s19, 0
      %p149 = por %p147, %p148
      %p150 = scmp.ne.s32.totalorder %s142, %s144
      %p151 = scmp.eq.s32.totalorder %s24, 1
      %p152 = por %p150, %p151
      %p153 = scmp.ne.s32.totalorder %s144, %s145
      %p154 = scmp.eq.s32.totalorder %s24, 0
      %p155 = por %p153, %p154
      %p156 = scmp.ne.s32.totalorder %s144, %s145
      %p157 = scmp.eq.s32.totalorder %s25, 1
      %p158 = por %p156, %p157
      %p160 = scmp.ne.s32.totalorder %s145, %s159
      %p161 = scmp.eq.s32.totalorder %s25, 0
      %p162 = por %p160, %p161
      %s164 = sadd.s32 %s163, 1
      %p167 = scmp.eq.s32.totalorder %s19, 1
      %p168 = scmp.ne.s32.totalorder %s163, %s165
      %p169 = scmp.eq.s32.totalorder %s19, 0
      %p170 = por %p168, %p169
      %p171 = scmp.ne.s32.totalorder %s163, %s165
      %p172 = scmp.eq.s32.totalorder %s24, 1
      %p173 = por %p171, %p172
      %p174 = scmp.ne.s32.totalorder %s165, %s166
      %p175 = scmp.eq.s32.totalorder %s24, 0
      %p176 = por %p174, %p175
      %p177 = scmp.ne.s32.totalorder %s165, %s166
      %p178 = scmp.eq.s32.totalorder %s25, 1
      %p179 = por %p177, %p178
      %p181 = scmp.ne.s32.totalorder %s166, %s180
      %p182 = scmp.eq.s32.totalorder %s25, 0
      %p183 = por %p181, %p182
      %s185 = sadd.s32 %s184, 1
      %p188 = scmp.eq.s32.totalorder %s19, 1
      %p189 = scmp.ne.s32.totalorder %s184, %s186
      %p190 = scmp.eq.s32.totalorder %s19, 0
      %p191 = por %p189, %p190
      %p192 = scmp.ne.s32.totalorder %s184, %s186
      %p193 = scmp.eq.s32.totalorder %s24, 1
      %p194 = por %p192, %p193
      %p195 = scmp.ne.s32.totalorder %s186, %s187
      %p196 = scmp.eq.s32.totalorder %s24, 0
      %p197 = por %p195, %p196
      %p198 = scmp.ne.s32.totalorder %s186, %s187
      %p199 = scmp.eq.s32.totalorder %s25, 1
      %p200 = por %p198, %p199
      %p202 = scmp.ne.s32.totalorder %s187, %s201
      %p203 = scmp.eq.s32.totalorder %s25, 0
      %p204 = por %p202, %p203
      %s206 = sadd.s32 %s205, 1
      %p209 = scmp.eq.s32.totalorder %s19, 1
      %p210 = scmp.ne.s32.totalorder %s205, %s207
      %p211 = scmp.eq.s32.totalorder %s19, 0
      %p212 = por %p210, %p211
      %p213 = scmp.ne.s32.totalorder %s205, %s207
      %p214 = scmp.eq.s32.totalorder %s24, 1
      %p215 = por %p213, %p214
      %p216 = scmp.ne.s32.totalorder %s207, %s208
      %p217 = scmp.eq.s32.totalorder %s24, 0
      %p218 = por %p216, %p217
      %p219 = scmp.ne.s32.totalorder %s207, %s208
      %p220 = scmp.eq.s32.totalorder %s25, 1
      %p221 = por %p219, %p220
      %p223 = scmp.ne.s32.totalorder %s208, %s222
      %p224 = scmp.eq.s32.totalorder %s25, 0
      %p225 = por %p223, %p224
      %s227 = sadd.s32 %s226, 1
      %p230 = scmp.eq.s32.totalorder %s19, 1
      %p231 = scmp.ne.s32.totalorder %s226, %s228
      %p232 = scmp.eq.s32.totalorder %s19, 0
      %p233 = por %p231, %p232
      %p234 = scmp.ne.s32.totalorder %s226, %s228
      %p235 = scmp.eq.s32.totalorder %s24, 1
      %p236 = por %p234, %p235
      %p237 = scmp.ne.s32.totalorder %s228, %s229
      %p238 = scmp.eq.s32.totalorder %s24, 0
      %p239 = por %p237, %p238
      %p240 = scmp.ne.s32.totalorder %s228, %s229
      %p241 = scmp.eq.s32.totalorder %s25, 1
      %p242 = por %p240, %p241
      %p244 = scmp.ne.s32.totalorder %s229, %s243
      %p245 = scmp.eq.s32.totalorder %s25, 0
      %p246 = por %p244, %p245
      %s247 = ssub.s32 %s19, %s26
      %p248 = scmp.eq.s32.totalorder %s247, 0
      %s250 = sadd.s32 %s249, 1
      %s251 = scalar_select %p248, %s249, %s250
      %p254 = pneg %p248
      %p255 = scmp.eq.s32.totalorder %s19, 1
      %p256 = por %p254, %p255
      %p257 = scmp.ne.s32.totalorder %s249, %s252
      %p258 = scmp.eq.s32.totalorder %s19, 0
      %p259 = por %p257, %p258
      %p260 = scmp.ne.s32.totalorder %s249, %s252
      %p261 = scmp.eq.s32.totalorder %s24, 1
      %p262 = por %p260, %p261
      %p263 = scmp.ne.s32.totalorder %s252, %s253
      %p264 = scmp.eq.s32.totalorder %s24, 0
      %p265 = por %p263, %p264
      %p266 = scmp.ne.s32.totalorder %s252, %s253
      %p267 = scmp.eq.s32.totalorder %s25, 1
      %p268 = por %p266, %p267
      %p270 = scmp.ne.s32.totalorder %s253, %s269
      %p271 = scmp.eq.s32.totalorder %s25, 0
      %p272 = por %p270, %p271
      %p273 = scmp.le.s32.totalorder 1, %s19
      %p274 = scmp.lt.s32.totalorder %s19, 3
      %p275 = pnand %p273, %p274
      %p276 = pneg %p275
      // Predicated region
      $region9: #{encoder_forward.3} parent=5 // pred_check
        _
      $region10: #{encoder_forward.3} parent=5 // pred_check_branch
        %278 = sbr.rel (%p275) target = $region12
      $region11: #{encoder_forward.3} parent=5 // pred_region
        %s279 = ssub.s32 %s19, 1
        // Predicated region
        $region13: #{encoder_forward.3} parent=11 // pred_check
          %p280 = pneg %p92
        $region14: #{encoder_forward.3} parent=11 // pred_check_branch
          %282 = sbr.rel (%p280) target = $region16
        $region15: #{encoder_forward.3} parent=11 // pred_region
          _
        $region16: #{encoder_forward.3} parent=11 // pred_fallthru
          _
        // Predicated region
        $region17: #{encoder_forward.3} parent=11 // pred_check
          %p283 = pneg %p113
        $region18: #{encoder_forward.3} parent=11 // pred_check_branch
          %285 = sbr.rel (%p283) target = $region20
        $region19: #{encoder_forward.3} parent=11 // pred_region
          _
        $region20: #{encoder_forward.3} parent=11 // pred_fallthru
          _
        // Predicated region
        $region21: #{encoder_forward.3} parent=11 // pred_check
          %p286 = pneg %p134
        $region22: #{encoder_forward.3} parent=11 // pred_check_branch
          %288 = sbr.rel (%p286) target = $region24
        $region23: #{encoder_forward.3} parent=11 // pred_region
          _
        $region24: #{encoder_forward.3} parent=11 // pred_fallthru
          _
        // Predicated region
        $region25: #{encoder_forward.3} parent=11 // pred_check
          %p289 = pneg %p155
        $region26: #{encoder_forward.3} parent=11 // pred_check_branch
          %291 = sbr.rel (%p289) target = $region28
        $region27: #{encoder_forward.3} parent=11 // pred_region
          _
        $region28: #{encoder_forward.3} parent=11 // pred_fallthru
          _
        // Predicated region
        $region29: #{encoder_forward.3} parent=11 // pred_check
          %p292 = pneg %p176
        $region30: #{encoder_forward.3} parent=11 // pred_check_branch
          %294 = sbr.rel (%p292) target = $region32
        $region31: #{encoder_forward.3} parent=11 // pred_region
          _
        $region32: #{encoder_forward.3} parent=11 // pred_fallthru
          _
        // Predicated region
        $region33: #{encoder_forward.3} parent=11 // pred_check
          %p295 = pneg %p197
        $region34: #{encoder_forward.3} parent=11 // pred_check_branch
          %297 = sbr.rel (%p295) target = $region36
        $region35: #{encoder_forward.3} parent=11 // pred_region
          _
        $region36: #{encoder_forward.3} parent=11 // pred_fallthru
          _
        // Predicated region
        $region37: #{encoder_forward.3} parent=11 // pred_check
          %p298 = pneg %p218
        $region38: #{encoder_forward.3} parent=11 // pred_check_branch
          %300 = sbr.rel (%p298) target = $region40
        $region39: #{encoder_forward.3} parent=11 // pred_region
          _
        $region40: #{encoder_forward.3} parent=11 // pred_fallthru
          _
        // Predicated region
        $region41: #{encoder_forward.3} parent=11 // pred_check
          %p301 = pneg %p239
        $region42: #{encoder_forward.3} parent=11 // pred_check_branch
          %303 = sbr.rel (%p301) target = $region44
        $region43: #{encoder_forward.3} parent=11 // pred_region
          _
        $region44: #{encoder_forward.3} parent=11 // pred_fallthru
          _
      $region12: #{encoder_forward.3} parent=5 // pred_fallthru
        _
      %p304 = scmp.lt.s32.totalorder %s19, 2
      // Predicated region
      $region45: #{encoder_forward.3} parent=5 // pred_check
        %p305 = pneg %p304
      $region46: #{encoder_forward.3} parent=5 // pred_check_branch
        %307 = sbr.rel (%p305) target = $region48
      $region47: #{encoder_forward.3} parent=5 // pred_region
        // Predicated region
        $region49: #{encoder_forward.3} parent=47 // pred_check
          %p308 = pneg %p39
        $region50: #{encoder_forward.3} parent=47 // pred_check_branch
          %310 = sbr.rel (%p308) target = $region52
        $region51: #{encoder_forward.3} parent=47 // pred_region
          %p311 = scmp.lt.s32.totalorder %s19, 1
          %s312 = scalar_select %p311, %s19, 1
          %s313 = smul.addr %s312, 4
          %s314 = scalar_lea.vmem %s0, %s313
        $region52: #{encoder_forward.3} parent=47 // pred_fallthru
          _
        // Predicated region
        $region53: #{encoder_forward.3} parent=47 // pred_check
          %p315 = pneg %p65
        $region54: #{encoder_forward.3} parent=47 // pred_check_branch
          %317 = sbr.rel (%p315) target = $region56
        $region55: #{encoder_forward.3} parent=47 // pred_region
          %p318 = scmp.lt.s32.totalorder %s19, 1
          %s319 = scalar_select %p318, %s19, 1
          %s320 = smul.addr %s319, 8
          %s321 = scalar_lea.vmem %s1, %s320
        $region56: #{encoder_forward.3} parent=47 // pred_fallthru
          _
      $region48: #{encoder_forward.3} parent=5 // pred_fallthru
        _
      %p322 = scmp.le.s32.totalorder 1, %s19
      %p323 = scmp.lt.s32.totalorder %s19, 3
      %p324 = pnand %p322, %p323
      %p325 = pneg %p324
      // Predicated region
      $region57: #{encoder_forward.3} parent=5 // pred_check
        _
      $region58: #{encoder_forward.3} parent=5 // pred_check_branch
        %327 = sbr.rel (%p324) target = $region60
      $region59: #{encoder_forward.3} parent=5 // pred_region
        %s328 = ssub.s32 %s19, 1
        %p329 = scmp.lt.s32.totalorder %s24, 1
        %s330 = scalar_select %p329, %s24, 1
        %s331 = smul.addr %s330, 4
        %s332 = scalar_lea.vmem %s0, %s331
        %p333 = pneg %p45
        %p334 = pneg %p42
        %p335 = scmp.lt.s32.totalorder %s24, 1
        %s336 = scalar_select %p335, %s24, 1
        %s337 = smul.addr %s336, 8
        %s338 = scalar_lea.vmem %s1, %s337
        %p339 = pneg %p71
        %p340 = pneg %p68
        %p341 = pneg %p92
        %p342 = pneg %p89
        %p343 = pneg %p113
        %p344 = pneg %p110
        %p345 = pneg %p134
        %p346 = pneg %p131
        %p347 = pneg %p155
        %p348 = pneg %p152
        %p349 = pneg %p176
        %p350 = pneg %p173
        %p351 = pneg %p197
        %p352 = pneg %p194
        %p353 = pneg %p218
        %p354 = pneg %p215
        %p355 = pneg %p239
        %p356 = pneg %p236
        %p357 = pneg %p265
        %p358 = pneg %p262
        %s359 = sand.u32 %s252, 1
        %s360 = scalar_lea.sflag [#allocation3], %s359
        %s361 = sand.u32 %s252, 1
        %s362 = smul.addr %s361, 8
        %s363 = scalar_lea.vmem [#allocation2], %s362
        %p364 = scmp.lt.s32.totalorder %s24, 1
        %s365 = scalar_select %p364, %s24, 1
        %s366 = smul.addr %s365, 4
        %s367 = scalar_lea.vmem %s0, %s366
        %p368 = scmp.lt.s32.totalorder %s24, 1
        %s369 = scalar_select %p368, %s24, 1
        %s370 = smul.addr %s369, 8
        %s371 = scalar_lea.vmem %s1, %s370
        %v373 = vld [vmem:[%s367] sm:$0xf]
        %v374 = vld [vmem:[%s371] sm:$0xff]
        %v375 = vld [vmem:[%s2] sm:$0xf]
        %v376 = vld [vmem:[%s2 + $0x4] sm:$0xf]
        %v377 = vld [vmem:[%s2 + $0x8] sm:$0xf]
        %v378 = vld [vmem:[%s2 + $0xc] sm:$0xf]
        %v379 = vld [vmem:[%s3] sm:$0x1]
        %v381 = vperm.slane %v379, 0
        %v387 = vunpack.c.l.b16 %v375
        %v388 = vunpack.c.l.b16 %v376
        %v389 = vunpack.c.l.b16 %v377
        %v390 = vunpack.c.l.b16 %v378
        %v391 = vpack.c.b16 %v388, %v387
        %v392 = vpack.c.b16 %v390, %v389
        %vm395 = vcmask 261120
        %v397 = vsel %vm395, %v373, 0
        %399 = vmatpush.bf16.msra.mxu0 0
        %400 = vmatpush.bf16.msra.mxu0 0
        %401 = vmatpush.bf16.msra.mxu0 0
        %402 = vmatpush.bf16.msra.mxu0 0
        %403 = vmatpush.bf16.msra.mxu0 0
        %404 = vmatpush.bf16.msra.mxu0 0
        %405 = vmatpush.bf16.msra.mxu0 %v392
        %406 = vmatpush.bf16.msra.mxu0 %v391
        %407 = vmatmul.bf16.gmra.mxu0 %v397
        %v408 = vpop.f32.mrf.mxu0
        %v409 = vadd.f32 %v381, %v408
        %v410 = vpop.f32.mrf.mxu0
        %411 = vdwg.mxu0
        %v412 = vadd.f32 %v409, %v374
        %v413 = vsel %vm395, %v412, 0.0
        %414 = vadd.xlane.f32.xlu0 %v413
        %v415 = vpop.xlane.xlu0 %414
        %v416 = vrcp.pop 32.0
        %v417 = vmul.f32 32.0, %v416
        %v418 = vsub.f32 1.0, %v417
        %v419 = vmul.f32 %v416, %v418
        %v420 = vadd.f32 %v416, %v419
        %vm421 = vweird.f32 %v416
        %v422 = vsel %vm421, %v416, %v420
        %v423 = vmul.f32 %v415, %v422
        %v424 = vsub.f32 %v412, %v423
        %v425 = vmul.f32 %v424, %v424
        %v426 = vsel %vm395, %v425, 0.0
        %427 = vadd.xlane.f32.xlu0 %v426
        %v428 = vpop.xlane.xlu0 %427
        %v429 = vmul.f32 %v428, %v422
        %v430 = vadd.f32 %v429, 1e-05
        %v431 = vrsqrt.pop %v430
        %v432 = vmul.f32 %v431, %v430
        %v433 = vmul.f32 %v432, %v431
        %v434 = vmul.f32 0.5, %v433
        %v435 = vsub.f32 1.5, %v434
        %v436 = vmul.f32 %v431, %v435
        %vm437 = vweird.f32 %v430
        %vm438 = vweird.f32 %v431
        %vm439 = vmor %vm437, %vm438
        %v440 = vsel %vm439, %v431, %v436
        %v441 = vmul.f32 %v424, %v440
        %v442 = vld [vmem:[%s4] sm:$0x1]
        %v444 = vperm.slane %v442, 0
        %v446 = vmul.f32 %v441, %v444
        %v447 = vld [vmem:[%s5] sm:$0x1]
        %v449 = vperm.slane %v447, 0
        %v451 = vadd.f32 %v446, %v449
        %v452 = vpack.c.bf16 %v451, %v451
        %v453 = vld [vmem:[%s6] sm:$0xf]
        %v454 = vld [vmem:[%s6 + $0x4] sm:$0xf]
        %v455 = vld [vmem:[%s6 + $0x8] sm:$0xf]
        %v456 = vld [vmem:[%s6 + $0xc] sm:$0xf]
        %v457 = vld [vmem:[%s7] sm:$0x1]
        %v459 = vperm.slane %v457, 0
        %v465 = vunpack.c.l.b16 %v453
        %v466 = vunpack.c.l.b16 %v454
        %v467 = vunpack.c.l.b16 %v455
        %v468 = vunpack.c.l.b16 %v456
        %v469 = vpack.c.b16 %v466, %v465
        %v470 = vpack.c.b16 %v468, %v467
        %v474 = vsel %vm395, %v452, 0
        %476 = vmatpush.bf16.msra.mxu0 0
        %477 = vmatpush.bf16.msra.mxu0 0
        %478 = vmatpush.bf16.msra.mxu0 0
        %479 = vmatpush.bf16.msra.mxu0 0
        %480 = vmatpush.bf16.msra.mxu0 0
        %481 = vmatpush.bf16.msra.mxu0 0
        %482 = vmatpush.bf16.msra.mxu0 %v470
        %483 = vmatpush.bf16.msra.mxu0 %v469
        %484 = vmatmul.bf16.gmra.mxu0 %v474
        %v485 = vpop.f32.mrf.mxu0
        %v486 = vadd.f32 %v459, %v485
        %v487 = vpop.f32.mrf.mxu0
        %488 = vdwg.mxu0
        %vm489 = vcmp.ge.f32.partialorder %v486, 0.0
        %v490 = vmul.f32 %v486, 0.01
        %v491 = vsel %vm489, %v486, %v490
        %v492 = vpack.c.bf16 %v491, %v491
        %v493 = vld [vmem:[%s8] sm:$0xf]
        %v494 = vld [vmem:[%s8 + $0x4] sm:$0xf]
        %v495 = vld [vmem:[%s8 + $0x8] sm:$0xf]
        %v496 = vld [vmem:[%s8 + $0xc] sm:$0xf]
        %v497 = vld [vmem:[%s8 + $0x10] sm:$0xf]
        %v498 = vld [vmem:[%s8 + $0x14] sm:$0xf]
        %v499 = vld [vmem:[%s8 + $0x18] sm:$0xf]
        %v500 = vld [vmem:[%s8 + $0x1c] sm:$0xf]
        %v501 = vld [vmem:[%s8 + $0x20] sm:$0xf]
        %v502 = vld [vmem:[%s8 + $0x24] sm:$0xf]
        %v503 = vld [vmem:[%s8 + $0x28] sm:$0xf]
        %v504 = vld [vmem:[%s8 + $0x2c] sm:$0xf]
        %v505 = vld [vmem:[%s8 + $0x30] sm:$0xf]
        %v506 = vld [vmem:[%s8 + $0x34] sm:$0xf]
        %v507 = vld [vmem:[%s8 + $0x38] sm:$0xf]
        %v508 = vld [vmem:[%s8 + $0x3c] sm:$0xf]
        %v509 = vld [vmem:[%s9] sm:$0x1]
        %v511 = vperm.slane %v509, 0
        %v529 = vunpack.c.l.b16 %v493
        %v530 = vunpack.c.l.b16 %v494
        %v531 = vunpack.c.l.b16 %v495
        %v532 = vunpack.c.l.b16 %v496
        %v533 = vunpack.c.l.b16 %v497
        %v534 = vunpack.c.l.b16 %v498
        %v535 = vunpack.c.l.b16 %v499
        %v536 = vunpack.c.l.b16 %v500
        %v537 = vunpack.c.l.b16 %v501
        %v538 = vunpack.c.l.b16 %v502
        %v539 = vunpack.c.l.b16 %v503
        %v540 = vunpack.c.l.b16 %v504
        %v541 = vunpack.c.l.b16 %v505
        %v542 = vunpack.c.l.b16 %v506
        %v543 = vunpack.c.l.b16 %v507
        %v544 = vunpack.c.l.b16 %v508
        %v545 = vpack.c.b16 %v530, %v529
        %v546 = vpack.c.b16 %v532, %v531
        %v547 = vpack.c.b16 %v534, %v533
        %v548 = vpack.c.b16 %v536, %v535
        %v549 = vpack.c.b16 %v538, %v537
        %v550 = vpack.c.b16 %v540, %v539
        %v551 = vpack.c.b16 %v542, %v541
        %v552 = vpack.c.b16 %v544, %v543
        %561 = vmatpush.bf16.msra.mxu0 %v552
        %562 = vmatpush.bf16.msra.mxu0 %v551
        %563 = vmatpush.bf16.msra.mxu0 %v550
        %564 = vmatpush.bf16.msra.mxu0 %v549
        %565 = vmatpush.bf16.msra.mxu0 %v548
        %566 = vmatpush.bf16.msra.mxu0 %v547
        %567 = vmatpush.bf16.msra.mxu0 %v546
        %568 = vmatpush.bf16.msra.mxu0 %v545
        %569 = vmatmul.bf16.gmra.mxu0 %v492
        %v570 = vpop.f32.mrf.mxu0
        %v571 = vadd.f32 %v511, %v570
        %v572 = vpop.f32.mrf.mxu0
        %573 = vdwg.mxu0
        %v574 = vadd.f32 %v571, %v412
        %575 = vst.msk [vmem:[%s363] sm:$0xff] %vm395, %v574
        %s576 = sand.u32 %s252, 1
        %s577 = scalar_lea.sflag [#allocation3], %s576
        %s578 = sand.u32 %s252, 1
        %s579 = smul.addr %s578, 8
        %s580 = scalar_lea.vmem [#allocation2], %s579
        // Predicated region
        $region61: #{encoder_forward.3} parent=59 // pred_check
          %p581 = pneg %p262
        $region62: #{encoder_forward.3} parent=59 // pred_check_branch
          %583 = sbr.rel (%p581) target = $region64
        $region63: #{encoder_forward.3} parent=59 // pred_region
          %585 = vsyncadd %s577, 0
          %s586 = smul.addr %s24, 8
          %s587 = scalar_lea.hbm %s10, %s586
          %s589 = sshll.u32 %s580, 4
          %s590 = int_to_ptr.vmem [resolvable:$true] %s589
          %s591 = sshll.u32 %s587, 4
          %s592 = int_to_ptr.hbm [resolvable:$true] %s591
          %594 = dma.vmem_to_hbm [thread:$0]  %s590, 128, %s592, %s577
        $region64: #{encoder_forward.3} parent=59 // pred_fallthru
          _
      $region60: #{encoder_forward.3} parent=5 // pred_fallthru
        _
      %p595 = scmp.le.s32.totalorder 2, %s19
      // Predicated region
      $region65: #{encoder_forward.3} parent=5 // pred_check
        %p596 = pneg %p595
      $region66: #{encoder_forward.3} parent=5 // pred_check_branch
        %598 = sbr.rel (%p596) target = $region68
      $region67: #{encoder_forward.3} parent=5 // pred_region
        %s599 = ssub.s32 %s19, 2
        // Predicated region
        $region69: #{encoder_forward.3} parent=67 // pred_check
          %p600 = pneg %p268
        $region70: #{encoder_forward.3} parent=67 // pred_check_branch
          %602 = sbr.rel (%p600) target = $region72
        $region71: #{encoder_forward.3} parent=67 // pred_region
          %s603 = sand.u32 %s253, 1
          %s604 = scalar_lea.sflag [#allocation3], %s603
          %s605 = sand.u32 %s253, 1
          %s606 = smul.addr %s605, 8
          %s607 = scalar_lea.vmem [#allocation2], %s606
          %609 = dma.done %s604, 128
        $region72: #{encoder_forward.3} parent=67 // pred_fallthru
          _
      $region68: #{encoder_forward.3} parent=5 // pred_fallthru
        _
    $region6: #{encoder_forward.3} parent=1 // loop_footer
      %s23 = sadd.s32 1, %s19
    $region7: #{encoder_forward.3} parent=1 // loop_footer_branch
      %18 = sbr.rel target = $region3
    $region8: #{encoder_forward.3} parent=1 // loop_exit
      _
    %610 = vsyncpa [#allocation3], 1
    %s611 = scalar_lea.sflag [#allocation3], 1
    %612 = vsyncpa %s611, 1

</llo_original>
